<compile_context>
chip_gen: v6e
topology: v6e:2x2x1
jax: 0.10.0
libtpu: 0.0.40
codegen_flags: <defaults>
</compile_context>

<pallas_src>
import functools

import jax
import jax.numpy as jnp
from jax.experimental import pallas as pl
from jax.experimental.pallas import tpu as pltpu

EMBD_SIZE = 128
DROPOUT_RATIO = 0.2  # identity in eval mode


def mha_kernel(k_ref, v_ref, q_ref, wk_ref, wq_ref, wv_ref, wp_ref, bp_ref,
               o_ref, *, num_heads, head_size):
    # k_ref/v_ref/q_ref : (Bb, T, E)
    # wk/wq/wv          : (E, H*hs) fused, head-major column blocks
    #                     (wq already carries the sqrt(head_size) MULTIPLY)
    # wp                : (H*hs, E)
    # bp                : (1, E)
    Bb, T, E = k_ref.shape

    # Flatten batch*seq into the matmul M dimension (leading-dim merge: free).
    kf = k_ref[...].reshape(Bb * T, E)
    vf = v_ref[...].reshape(Bb * T, E)
    qf = q_ref[...].reshape(Bb * T, E)

    # Lane-dense projections: (Bb*T, E) @ (E, H*hs) -> (Bb*T, H*hs).
    K = jnp.dot(kf, wk_ref[...], preferred_element_type=jnp.float32)
    Q = jnp.dot(qf, wq_ref[...], preferred_element_type=jnp.float32)
    V = jnp.dot(vf, wv_ref[...], preferred_element_type=jnp.float32)

    # Per-head attention (independent chains; static unroll interleaves them).
    head_outs = []
    for h in range(num_heads):
        lo = h * head_size
        Kh = K[:, lo:lo + head_size].reshape(Bb, T, head_size)
        Qh = Q[:, lo:lo + head_size].reshape(Bb, T, head_size)
        Vh = V[:, lo:lo + head_size].reshape(Bb, T, head_size)

        s = jnp.einsum('btd,bsd->bts', Qh, Kh,
                       preferred_element_type=jnp.float32)        # (Bb, T, T)
        s = s - jnp.max(s, axis=-1, keepdims=True)
        e = jnp.exp(s)
        wei = e / jnp.sum(e, axis=-1, keepdims=True)               # exact div
        Oh = jnp.einsum('bts,bsd->btd', wei, Vh,
                        preferred_element_type=jnp.float32)        # (Bb, T, hs)
        head_outs.append(Oh.reshape(Bb * T, head_size))

    # Static lane concat + one full-depth (K = H*hs = 128) output projection.
    cat = jnp.concatenate(head_outs, axis=-1)                      # (Bb*T, H*hs)
    out = jnp.dot(cat, wp_ref[...],
                  preferred_element_type=jnp.float32) + bp_ref[...]
    o_ref[...] = out.reshape(Bb, T, E).astype(o_ref.dtype)


def prepare_params(wk_h, wq_h, wv_h, wp_h, bp, *, head_size):
    """Fuse per-head weights into lane-dense slabs; fold the Q scale (host side).

    Inputs (per-head stacked, x @ W convention, i.e. nn.Linear weight.T):
      wk_h/wq_h/wv_h : (H, E, hs)
      wp_h           : (H, hs, E)   proj weight rows, split by head block
      bp             : (1, E)
    """
    H, E, hs = wk_h.shape
    fuse = lambda w: jnp.transpose(w, (1, 0, 2)).reshape(E, H * hs)
    wk = fuse(wk_h)
    wq = fuse(wq_h) * (head_size ** 0.5)   # PyTorch MULTIPLIES by sqrt(hs)
    wv = fuse(wv_h)
    wp = wp_h.reshape(H * hs, E)
    return wk, wq, wv, wp, bp


def multi_head_attention(k, v, q, fused_params, *, num_heads, head_size,
                         batch_block=None):
    B, T, E = k.shape
    assert E == EMBD_SIZE
    wk, wq, wv, wp, bp = fused_params
    if batch_block is None:
        batch_block = B  # small B: whole batch in one grid step (max M rows)
    assert B % batch_block == 0
    hd = num_heads * head_size

    kernel = functools.partial(mha_kernel, num_heads=num_heads,
                               head_size=head_size)
    return pl.pallas_call(
        kernel,
        out_shape=jax.ShapeDtypeStruct((B, T, E), k.dtype),
        grid=(B // batch_block,),
        in_specs=[
            pl.BlockSpec((batch_block, T, E), lambda b: (b, 0, 0)),
            pl.BlockSpec((batch_block, T, E), lambda b: (b, 0, 0)),
            pl.BlockSpec((batch_block, T, E), lambda b: (b, 0, 0)),
            pl.BlockSpec((E, hd), lambda b: (0, 0)),
            pl.BlockSpec((E, hd), lambda b: (0, 0)),
            pl.BlockSpec((E, hd), lambda b: (0, 0)),
            pl.BlockSpec((hd, E), lambda b: (0, 0)),
            pl.BlockSpec((1, E), lambda b: (0, 0)),
        ],
        out_specs=pl.BlockSpec((batch_block, T, E), lambda b: (b, 0, 0)),
        compiler_params=pltpu.CompilerParams(
            dimension_semantics=("parallel",)),
    )(k, v, q, wk, wq, wv, wp, bp)


def reference_mha(k, v, q, per_head_params, *, num_heads, head_size):
    """Pure-JAX reference reproducing the PyTorch forward (eval mode)."""
    wk, wq, wv, wp, bp = per_head_params  # (H,E,hs) x3, (H,hs,E), (1,E)
    outs = []
    for h in range(num_heads):
        K = k @ wk[h]
        Q = q @ wq[h]
        V = v @ wv[h]
        s = Q @ jnp.swapaxes(K, -2, -1) * head_size ** 0.5  # module MULTIPLIES
        w = jax.nn.softmax(s, axis=-1)
        outs.append(w @ V)
    cat = jnp.concatenate(outs, axis=-1)
    return cat @ wp.reshape(num_heads * head_size, EMBD_SIZE) + bp


if __name__ == "__main__":
    B, T = 2, 8
    num_heads, head_size = 4, 32

    root = jax.random.PRNGKey(0)
    ks = jax.random.split(root, 8)

    # Per-head stacked params (shapes match nn.Linear weights, pre-transposed
    # so the reference does x @ W).
    wk_h = 0.02 * jax.random.normal(ks[0], (num_heads, EMBD_SIZE, head_size),
                                    jnp.float32)
    wq_h = 0.02 * jax.random.normal(ks[1], (num_heads, EMBD_SIZE, head_size),
                                    jnp.float32)
    wv_h = 0.02 * jax.random.normal(ks[2], (num_heads, EMBD_SIZE, head_size),
                                    jnp.float32)
    wp_h = 0.02 * jax.random.normal(ks[3], (num_heads, head_size, EMBD_SIZE),
                                    jnp.float32)
    bp = 0.02 * jax.random.normal(ks[4], (1, EMBD_SIZE), jnp.float32)

    # Deterministic inputs.
    k = jax.random.normal(ks[5], (B, T, EMBD_SIZE), jnp.float32)
    v = jax.random.normal(ks[6], (B, T, EMBD_SIZE), jnp.float32)
    q = jax.random.normal(ks[7], (B, T, EMBD_SIZE), jnp.float32)

    fused = prepare_params(wk_h, wq_h, wv_h, wp_h, bp, head_size=head_size)
    out = multi_head_attention(k, v, q, fused,
                               num_heads=num_heads, head_size=head_size)
    out = jax.block_until_ready(out)

    ref = reference_mha(k, v, q, (wk_h, wq_h, wv_h, wp_h, bp),
                        num_heads=num_heads, head_size=head_size)
    assert out.shape == (B, T, EMBD_SIZE)
    max_err = float(jnp.max(jnp.abs(out - ref)))
    assert jnp.allclose(out, ref, atol=1e-4, rtol=1e-4), max_err

    print("KERNEL_OK")
</pallas_src>

<mosaic_0001>
module attributes {stable_mosaic.version = 11 : i64} {
  func.func @mha_kernel(%arg0: i32, %arg1: memref<2x8x128xf32, #tpu.memory_space<vmem>>, %arg2: memref<2x8x128xf32, #tpu.memory_space<vmem>>, %arg3: memref<2x8x128xf32, #tpu.memory_space<vmem>>, %arg4: memref<128x128xf32, #tpu.memory_space<vmem>>, %arg5: memref<128x128xf32, #tpu.memory_space<vmem>>, %arg6: memref<128x128xf32, #tpu.memory_space<vmem>>, %arg7: memref<128x128xf32, #tpu.memory_space<vmem>>, %arg8: memref<1x128xf32, #tpu.memory_space<vmem>>, %arg9: memref<2x8x128xf32, #tpu.memory_space<vmem>>) attributes {dimension_semantics = [#tpu.dimension_semantics<parallel>], iteration_bounds = array<i64: 1>, scalar_prefetch = 0 : i64, scratch_operands = 0 : i64, tpu.core_type = #tpu.core_type<tc>, window_params = [{transform_indices = @transform_0, window_bounds = array<i64: 2, 8, 128>}, {transform_indices = @transform_1, window_bounds = array<i64: 2, 8, 128>}, {transform_indices = @transform_2, window_bounds = array<i64: 2, 8, 128>}, {pipeline_mode = #tpu.pipeline_mode<synchronous>, transform_indices = @transform_3, window_bounds = array<i64: 128, 128>}, {pipeline_mode = #tpu.pipeline_mode<synchronous>, transform_indices = @transform_4, window_bounds = array<i64: 128, 128>}, {pipeline_mode = #tpu.pipeline_mode<synchronous>, transform_indices = @transform_5, window_bounds = array<i64: 128, 128>}, {pipeline_mode = #tpu.pipeline_mode<synchronous>, transform_indices = @transform_6, window_bounds = array<i64: 128, 128>}, {pipeline_mode = #tpu.pipeline_mode<synchronous>, transform_indices = @transform_7, window_bounds = array<i64: 1, 128>}, {transform_indices = @transform_8, window_bounds = array<i64: 2, 8, 128>}]} {
    %c0 = arith.constant 0 : index
    %c0_0 = arith.constant 0 : index
    %c0_1 = arith.constant 0 : index
    %0 = vector.load %arg1[%c0, %c0_0, %c0_1] : memref<2x8x128xf32, #tpu.memory_space<vmem>>, vector<2x8x128xf32>
    %1 = vector.shape_cast %0 : vector<2x8x128xf32> to vector<16x128xf32>
    %c0_2 = arith.constant 0 : index
    %c0_3 = arith.constant 0 : index
    %c0_4 = arith.constant 0 : index
    %2 = vector.load %arg2[%c0_2, %c0_3, %c0_4] : memref<2x8x128xf32, #tpu.memory_space<vmem>>, vector<2x8x128xf32>
    %3 = vector.shape_cast %2 : vector<2x8x128xf32> to vector<16x128xf32>
    %c0_5 = arith.constant 0 : index
    %c0_6 = arith.constant 0 : index
    %c0_7 = arith.constant 0 : index
    %4 = vector.load %arg3[%c0_5, %c0_6, %c0_7] : memref<2x8x128xf32, #tpu.memory_space<vmem>>, vector<2x8x128xf32>
    %5 = vector.shape_cast %4 : vector<2x8x128xf32> to vector<16x128xf32>
    %c0_8 = arith.constant 0 : index
    %c0_9 = arith.constant 0 : index
    %6 = vector.load %arg4[%c0_8, %c0_9] : memref<128x128xf32, #tpu.memory_space<vmem>>, vector<128x128xf32>
    %cst = arith.constant dense<0.000000e+00> : vector<16x128xf32>
    %7 = tpu.matmul %1, %6, %cst {dimension_numbers = #tpu.dot_dimension_numbers<[1], [0], [0], [1], [0, 0, 1, 1], [], []>} : vector<16x128xf32>, vector<128x128xf32>, vector<16x128xf32> -> vector<16x128xf32>
    %c0_10 = arith.constant 0 : index
    %c0_11 = arith.constant 0 : index
    %8 = vector.load %arg5[%c0_10, %c0_11] : memref<128x128xf32, #tpu.memory_space<vmem>>, vector<128x128xf32>
    %cst_12 = arith.constant dense<0.000000e+00> : vector<16x128xf32>
    %9 = tpu.matmul %5, %8, %cst_12 {dimension_numbers = #tpu.dot_dimension_numbers<[1], [0], [0], [1], [0, 0, 1, 1], [], []>} : vector<16x128xf32>, vector<128x128xf32>, vector<16x128xf32> -> vector<16x128xf32>
    %c0_13 = arith.constant 0 : index
    %c0_14 = arith.constant 0 : index
    %10 = vector.load %arg6[%c0_13, %c0_14] : memref<128x128xf32, #tpu.memory_space<vmem>>, vector<128x128xf32>
    %cst_15 = arith.constant dense<0.000000e+00> : vector<16x128xf32>
    %11 = tpu.matmul %3, %10, %cst_15 {dimension_numbers = #tpu.dot_dimension_numbers<[1], [0], [0], [1], [0, 0, 1, 1], [], []>} : vector<16x128xf32>, vector<128x128xf32>, vector<16x128xf32> -> vector<16x128xf32>
    %12 = vector.extract_strided_slice %7 {offsets = [0, 0], sizes = [16, 32], strides = [1, 1]} : vector<16x128xf32> to vector<16x32xf32>
    %13 = vector.shape_cast %12 : vector<16x32xf32> to vector<2x8x32xf32>
    %14 = vector.extract_strided_slice %9 {offsets = [0, 0], sizes = [16, 32], strides = [1, 1]} : vector<16x128xf32> to vector<16x32xf32>
    %15 = vector.shape_cast %14 : vector<16x32xf32> to vector<2x8x32xf32>
    %16 = vector.extract_strided_slice %11 {offsets = [0, 0], sizes = [16, 32], strides = [1, 1]} : vector<16x128xf32> to vector<16x32xf32>
    %17 = vector.shape_cast %16 : vector<16x32xf32> to vector<2x8x32xf32>
    "tpu.trace_start"() <{level = 10 : i32, message = "btd,bsd->bts"}> : () -> ()
    %cst_16 = arith.constant dense<0.000000e+00> : vector<2x8x8xf32>
    %18 = tpu.matmul %15, %13, %cst_16 {dimension_numbers = #tpu.dot_dimension_numbers<[2], [2], [1], [1], [0, 0, 0, 1, 1, 1], [0], [0]>} : vector<2x8x32xf32>, vector<2x8x32xf32>, vector<2x8x8xf32> -> vector<2x8x8xf32>
    "tpu.trace_stop"() : () -> ()
    %cst_17 = arith.constant dense<0xFF800000> : vector<2x8xf32>
    %19 = vector.multi_reduction <maximumf>, %18, %cst_17 [2] : vector<2x8x8xf32> to vector<2x8xf32>
    %20 = vector.shape_cast %19 : vector<2x8xf32> to vector<2x8x1xf32>
    %21 = vector.broadcast %20 : vector<2x8x1xf32> to vector<2x8x8xf32>
    %22 = arith.subf %18, %21 : vector<2x8x8xf32>
    %23 = math.exp %22 : vector<2x8x8xf32>
    %cst_18 = arith.constant dense<0.000000e+00> : vector<2x8xf32>
    %24 = vector.multi_reduction <add>, %23, %cst_18 [2] : vector<2x8x8xf32> to vector<2x8xf32>
    %25 = vector.shape_cast %24 : vector<2x8xf32> to vector<2x8x1xf32>
    %26 = vector.broadcast %25 : vector<2x8x1xf32> to vector<2x8x8xf32>
    %27 = arith.divf %23, %26 : vector<2x8x8xf32>
    "tpu.trace_start"() <{level = 10 : i32, message = "bts,bsd->btd"}> : () -> ()
    %cst_19 = arith.constant dense<0.000000e+00> : vector<2x8x32xf32>
    %28 = tpu.matmul %27, %17, %cst_19 {dimension_numbers = #tpu.dot_dimension_numbers<[2], [1], [1], [2], [0, 0, 0, 1, 1, 2], [0], [0]>} : vector<2x8x8xf32>, vector<2x8x32xf32>, vector<2x8x32xf32> -> vector<2x8x32xf32>
    "tpu.trace_stop"() : () -> ()
    %29 = vector.shape_cast %28 : vector<2x8x32xf32> to vector<16x32xf32>
    %30 = vector.extract_strided_slice %7 {offsets = [0, 32], sizes = [16, 32], strides = [1, 1]} : vector<16x128xf32> to vector<16x32xf32>
    %31 = vector.shape_cast %30 : vector<16x32xf32> to vector<2x8x32xf32>
    %32 = vector.extract_strided_slice %9 {offsets = [0, 32], sizes = [16, 32], strides = [1, 1]} : vector<16x128xf32> to vector<16x32xf32>
    %33 = vector.shape_cast %32 : vector<16x32xf32> to vector<2x8x32xf32>
    %34 = vector.extract_strided_slice %11 {offsets = [0, 32], sizes = [16, 32], strides = [1, 1]} : vector<16x128xf32> to vector<16x32xf32>
    %35 = vector.shape_cast %34 : vector<16x32xf32> to vector<2x8x32xf32>
    "tpu.trace_start"() <{level = 10 : i32, message = "btd,bsd->bts"}> : () -> ()
    %cst_20 = arith.constant dense<0.000000e+00> : vector<2x8x8xf32>
    %36 = tpu.matmul %33, %31, %cst_20 {dimension_numbers = #tpu.dot_dimension_numbers<[2], [2], [1], [1], [0, 0, 0, 1, 1, 1], [0], [0]>} : vector<2x8x32xf32>, vector<2x8x32xf32>, vector<2x8x8xf32> -> vector<2x8x8xf32>
    "tpu.trace_stop"() : () -> ()
    %cst_21 = arith.constant dense<0xFF800000> : vector<2x8xf32>
    %37 = vector.multi_reduction <maximumf>, %36, %cst_21 [2] : vector<2x8x8xf32> to vector<2x8xf32>
    %38 = vector.shape_cast %37 : vector<2x8xf32> to vector<2x8x1xf32>
    %39 = vector.broadcast %38 : vector<2x8x1xf32> to vector<2x8x8xf32>
    %40 = arith.subf %36, %39 : vector<2x8x8xf32>
    %41 = math.exp %40 : vector<2x8x8xf32>
    %cst_22 = arith.constant dense<0.000000e+00> : vector<2x8xf32>
    %42 = vector.multi_reduction <add>, %41, %cst_22 [2] : vector<2x8x8xf32> to vector<2x8xf32>
    %43 = vector.shape_cast %42 : vector<2x8xf32> to vector<2x8x1xf32>
    %44 = vector.broadcast %43 : vector<2x8x1xf32> to vector<2x8x8xf32>
    %45 = arith.divf %41, %44 : vector<2x8x8xf32>
    "tpu.trace_start"() <{level = 10 : i32, message = "bts,bsd->btd"}> : () -> ()
    %cst_23 = arith.constant dense<0.000000e+00> : vector<2x8x32xf32>
    %46 = tpu.matmul %45, %35, %cst_23 {dimension_numbers = #tpu.dot_dimension_numbers<[2], [1], [1], [2], [0, 0, 0, 1, 1, 2], [0], [0]>} : vector<2x8x8xf32>, vector<2x8x32xf32>, vector<2x8x32xf32> -> vector<2x8x32xf32>
    "tpu.trace_stop"() : () -> ()
    %47 = vector.shape_cast %46 : vector<2x8x32xf32> to vector<16x32xf32>
    %48 = vector.extract_strided_slice %7 {offsets = [0, 64], sizes = [16, 32], strides = [1, 1]} : vector<16x128xf32> to vector<16x32xf32>
    %49 = vector.shape_cast %48 : vector<16x32xf32> to vector<2x8x32xf32>
    %50 = vector.extract_strided_slice %9 {offsets = [0, 64], sizes = [16, 32], strides = [1, 1]} : vector<16x128xf32> to vector<16x32xf32>
    %51 = vector.shape_cast %50 : vector<16x32xf32> to vector<2x8x32xf32>
    %52 = vector.extract_strided_slice %11 {offsets = [0, 64], sizes = [16, 32], strides = [1, 1]} : vector<16x128xf32> to vector<16x32xf32>
    %53 = vector.shape_cast %52 : vector<16x32xf32> to vector<2x8x32xf32>
    "tpu.trace_start"() <{level = 10 : i32, message = "btd,bsd->bts"}> : () -> ()
    %cst_24 = arith.constant dense<0.000000e+00> : vector<2x8x8xf32>
    %54 = tpu.matmul %51, %49, %cst_24 {dimension_numbers = #tpu.dot_dimension_numbers<[2], [2], [1], [1], [0, 0, 0, 1, 1, 1], [0], [0]>} : vector<2x8x32xf32>, vector<2x8x32xf32>, vector<2x8x8xf32> -> vector<2x8x8xf32>
    "tpu.trace_stop"() : () -> ()
    %cst_25 = arith.constant dense<0xFF800000> : vector<2x8xf32>
    %55 = vector.multi_reduction <maximumf>, %54, %cst_25 [2] : vector<2x8x8xf32> to vector<2x8xf32>
    %56 = vector.shape_cast %55 : vector<2x8xf32> to vector<2x8x1xf32>
    %57 = vector.broadcast %56 : vector<2x8x1xf32> to vector<2x8x8xf32>
    %58 = arith.subf %54, %57 : vector<2x8x8xf32>
    %59 = math.exp %58 : vector<2x8x8xf32>
    %cst_26 = arith.constant dense<0.000000e+00> : vector<2x8xf32>
    %60 = vector.multi_reduction <add>, %59, %cst_26 [2] : vector<2x8x8xf32> to vector<2x8xf32>
    %61 = vector.shape_cast %60 : vector<2x8xf32> to vector<2x8x1xf32>
    %62 = vector.broadcast %61 : vector<2x8x1xf32> to vector<2x8x8xf32>
    %63 = arith.divf %59, %62 : vector<2x8x8xf32>
    "tpu.trace_start"() <{level = 10 : i32, message = "bts,bsd->btd"}> : () -> ()
    %cst_27 = arith.constant dense<0.000000e+00> : vector<2x8x32xf32>
    %64 = tpu.matmul %63, %53, %cst_27 {dimension_numbers = #tpu.dot_dimension_numbers<[2], [1], [1], [2], [0, 0, 0, 1, 1, 2], [0], [0]>} : vector<2x8x8xf32>, vector<2x8x32xf32>, vector<2x8x32xf32> -> vector<2x8x32xf32>
    "tpu.trace_stop"() : () -> ()
    %65 = vector.shape_cast %64 : vector<2x8x32xf32> to vector<16x32xf32>
    %66 = vector.extract_strided_slice %7 {offsets = [0, 96], sizes = [16, 32], strides = [1, 1]} : vector<16x128xf32> to vector<16x32xf32>
    %67 = vector.shape_cast %66 : vector<16x32xf32> to vector<2x8x32xf32>
    %68 = vector.extract_strided_slice %9 {offsets = [0, 96], sizes = [16, 32], strides = [1, 1]} : vector<16x128xf32> to vector<16x32xf32>
    %69 = vector.shape_cast %68 : vector<16x32xf32> to vector<2x8x32xf32>
    %70 = vector.extract_strided_slice %11 {offsets = [0, 96], sizes = [16, 32], strides = [1, 1]} : vector<16x128xf32> to vector<16x32xf32>
    %71 = vector.shape_cast %70 : vector<16x32xf32> to vector<2x8x32xf32>
    "tpu.trace_start"() <{level = 10 : i32, message = "btd,bsd->bts"}> : () -> ()
    %cst_28 = arith.constant dense<0.000000e+00> : vector<2x8x8xf32>
    %72 = tpu.matmul %69, %67, %cst_28 {dimension_numbers = #tpu.dot_dimension_numbers<[2], [2], [1], [1], [0, 0, 0, 1, 1, 1], [0], [0]>} : vector<2x8x32xf32>, vector<2x8x32xf32>, vector<2x8x8xf32> -> vector<2x8x8xf32>
    "tpu.trace_stop"() : () -> ()
    %cst_29 = arith.constant dense<0xFF800000> : vector<2x8xf32>
    %73 = vector.multi_reduction <maximumf>, %72, %cst_29 [2] : vector<2x8x8xf32> to vector<2x8xf32>
    %74 = vector.shape_cast %73 : vector<2x8xf32> to vector<2x8x1xf32>
    %75 = vector.broadcast %74 : vector<2x8x1xf32> to vector<2x8x8xf32>
    %76 = arith.subf %72, %75 : vector<2x8x8xf32>
    %77 = math.exp %76 : vector<2x8x8xf32>
    %cst_30 = arith.constant dense<0.000000e+00> : vector<2x8xf32>
    %78 = vector.multi_reduction <add>, %77, %cst_30 [2] : vector<2x8x8xf32> to vector<2x8xf32>
    %79 = vector.shape_cast %78 : vector<2x8xf32> to vector<2x8x1xf32>
    %80 = vector.broadcast %79 : vector<2x8x1xf32> to vector<2x8x8xf32>
    %81 = arith.divf %77, %80 : vector<2x8x8xf32>
    "tpu.trace_start"() <{level = 10 : i32, message = "bts,bsd->btd"}> : () -> ()
    %cst_31 = arith.constant dense<0.000000e+00> : vector<2x8x32xf32>
    %82 = tpu.matmul %81, %71, %cst_31 {dimension_numbers = #tpu.dot_dimension_numbers<[2], [1], [1], [2], [0, 0, 0, 1, 1, 2], [0], [0]>} : vector<2x8x8xf32>, vector<2x8x32xf32>, vector<2x8x32xf32> -> vector<2x8x32xf32>
    "tpu.trace_stop"() : () -> ()
    %83 = vector.shape_cast %82 : vector<2x8x32xf32> to vector<16x32xf32>
    %84 = tpu.concatenate %29, %47, %65, %83 in 1 : vector<16x32xf32>, vector<16x32xf32>, vector<16x32xf32>, vector<16x32xf32> -> vector<16x128xf32>
    %c0_32 = arith.constant 0 : index
    %c0_33 = arith.constant 0 : index
    %85 = vector.load %arg7[%c0_32, %c0_33] : memref<128x128xf32, #tpu.memory_space<vmem>>, vector<128x128xf32>
    %cst_34 = arith.constant dense<0.000000e+00> : vector<16x128xf32>
    %86 = tpu.matmul %84, %85, %cst_34 {dimension_numbers = #tpu.dot_dimension_numbers<[1], [0], [0], [1], [0, 0, 1, 1], [], []>} : vector<16x128xf32>, vector<128x128xf32>, vector<16x128xf32> -> vector<16x128xf32>
    %c0_35 = arith.constant 0 : index
    %c0_36 = arith.constant 0 : index
    %87 = vector.load %arg8[%c0_35, %c0_36] : memref<1x128xf32, #tpu.memory_space<vmem>>, vector<1x128xf32>
    %88 = vector.broadcast %87 : vector<1x128xf32> to vector<16x128xf32>
    %89 = arith.addf %86, %88 : vector<16x128xf32>
    %90 = vector.shape_cast %89 : vector<16x128xf32> to vector<2x8x128xf32>
    %c0_37 = arith.constant 0 : index
    %c0_38 = arith.constant 0 : index
    %c0_39 = arith.constant 0 : index
    %91 = vector.load %arg9[%c0_37, %c0_38, %c0_39] : memref<2x8x128xf32, #tpu.memory_space<vmem>>, vector<2x8x128xf32>
    tpu.vector_store %arg9[%c0_37, %c0_38, %c0_39], %90 {strides = array<i32>} : memref<2x8x128xf32, #tpu.memory_space<vmem>>, vector<2x8x128xf32>,
    return
  }
  func.func @transform_0(%arg0: i32) -> (i32, i32, i32) {
    %c0_i32 = arith.constant 0 : i32
    %c0_i32_0 = arith.constant 0 : i32
    %c0_i32_1 = arith.constant 0 : i32
    return %arg0, %c0_i32, %c0_i32_0 : i32, i32, i32
  }
  func.func @transform_1(%arg0: i32) -> (i32, i32, i32) {
    %c0_i32 = arith.constant 0 : i32
    %c0_i32_0 = arith.constant 0 : i32
    %c0_i32_1 = arith.constant 0 : i32
    return %arg0, %c0_i32, %c0_i32_0 : i32, i32, i32
  }
  func.func @transform_2(%arg0: i32) -> (i32, i32, i32) {
    %c0_i32 = arith.constant 0 : i32
    %c0_i32_0 = arith.constant 0 : i32
    %c0_i32_1 = arith.constant 0 : i32
    return %arg0, %c0_i32, %c0_i32_0 : i32, i32, i32
  }
  func.func @transform_3(%arg0: i32) -> (i32, i32) {
    %c0_i32 = arith.constant 0 : i32
    %c0_i32_0 = arith.constant 0 : i32
    %c0_i32_1 = arith.constant 0 : i32
    return %c0_i32, %c0_i32_0 : i32, i32
  }
  func.func @transform_4(%arg0: i32) -> (i32, i32) {
    %c0_i32 = arith.constant 0 : i32
    %c0_i32_0 = arith.constant 0 : i32
    %c0_i32_1 = arith.constant 0 : i32
    return %c0_i32, %c0_i32_0 : i32, i32
  }
  func.func @transform_5(%arg0: i32) -> (i32, i32) {
    %c0_i32 = arith.constant 0 : i32
    %c0_i32_0 = arith.constant 0 : i32
    %c0_i32_1 = arith.constant 0 : i32
    return %c0_i32, %c0_i32_0 : i32, i32
  }
  func.func @transform_6(%arg0: i32) -> (i32, i32) {
    %c0_i32 = arith.constant 0 : i32
    %c0_i32_0 = arith.constant 0 : i32
    %c0_i32_1 = arith.constant 0 : i32
    return %c0_i32, %c0_i32_0 : i32, i32
  }
  func.func @transform_7(%arg0: i32) -> (i32, i32) {
    %c0_i32 = arith.constant 0 : i32
    %c0_i32_0 = arith.constant 0 : i32
    %c0_i32_1 = arith.constant 0 : i32
    return %c0_i32, %c0_i32_0 : i32, i32
  }
  func.func @transform_8(%arg0: i32) -> (i32, i32, i32) {
    %c0_i32 = arith.constant 0 : i32
    %c0_i32_0 = arith.constant 0 : i32
    %c0_i32_1 = arith.constant 0 : i32
    return %arg0, %c0_i32, %c0_i32_0 : i32, i32, i32
  }
}

</mosaic_0001>

<llo_original>
// kernel: tpu_custom_call.1
$region0: #{tpu_custom_call.1}
  #allocation0 [shape = 'u32[]', space=smem, size = 0x4, offset = 0x4, fixed_abs, tag = 'smem constant byte address 0x4 - core index']
  #allocation1 [shape = 'u32[144,128]{1,0:T(1,128)}', space=vmem, size = 0x12000, scoped, tag = 'internal scratch']
  %s0 = inlined_call_operand.hbm [shape: f32[2,8,128], index: 0, kind: input, shape index: {}]
  %s1 = inlined_call_operand.hbm [shape: f32[2,8,128], index: 1, kind: input, shape index: {}]
  %s2 = inlined_call_operand.hbm [shape: f32[2,8,128], index: 2, kind: input, shape index: {}]
  %s3 = inlined_call_operand.hbm [shape: f32[128,128], index: 3, kind: input, shape index: {}]
  %s4 = inlined_call_operand.hbm [shape: f32[128,128], index: 4, kind: input, shape index: {}]
  %s5 = inlined_call_operand.hbm [shape: f32[128,128], index: 5, kind: input, shape index: {}]
  %s6 = inlined_call_operand.hbm [shape: f32[128,128], index: 6, kind: input, shape index: {}]
  %s7 = inlined_call_operand.vmem [shape: f32[1,128], index: 7, kind: input, shape index: {}]
  %s8 = inlined_call_operand.hbm [shape: f32[2,8,128], index: 8, kind: output, shape index: {}]
  %s9 = sld [smem:[#allocation0]]
  $region70: #{tpu_custom_call.1} parent=0
    _
  %s11 = ssub.s32 1, %s9
  %s12 = scalar_select 0, %s11, %s9
  $region1: #{tpu_custom_call.1} parent=0
    #allocation2 [shape = 'u8[8192]{0}', space=vmem, size = 0x2000, scoped, tag = 'input window, operand 0, single buffered']
    #allocation3 [shape = 's32[1]{0}', space=sflag, size = 0x4, scoped, tag = 'scoped memory for tpu_custom_call.1']
    #allocation4 [shape = 's32[1]{0}', space=sflag, size = 0x4, scoped, tag = 'scoped memory for tpu_custom_call.1']
    #allocation5 [shape = 'u8[8192]{0}', space=vmem, size = 0x2000, scoped, tag = 'input window, operand 1, single buffered']
    #allocation6 [shape = 's32[1]{0}', space=sflag, size = 0x4, scoped, tag = 'scoped memory for tpu_custom_call.1']
    #allocation7 [shape = 'u8[8192]{0}', space=vmem, size = 0x2000, scoped, tag = 'input window, operand 2, single buffered']
    #allocation8 [shape = 'u8[65536]{0}', space=vmem, size = 0x10000, scoped, tag = 'input window, operand 3, single buffered']
    #allocation9 [shape = 's32[1]{0}', space=sflag, size = 0x4, scoped, tag = 'scoped memory for tpu_custom_call.1']
    #allocation10 [shape = 'u8[65536]{0}', space=vmem, size = 0x10000, scoped, tag = 'input window, operand 4, single buffered']
    #allocation11 [shape = 'u8[65536]{0}', space=vmem, size = 0x10000, scoped, tag = 'input window, operand 5, single buffered']
    #allocation12 [shape = 's32[1]{0}', space=sflag, size = 0x4, scoped, tag = 'scoped memory for tpu_custom_call.1']
    #allocation13 [shape = 'u8[65536]{0}', space=vmem, size = 0x10000, scoped, tag = 'input window, operand 6, single buffered']
    #allocation14 [shape = 'u8[8192]{0}', space=vmem, size = 0x2000, scoped, tag = 'output window, operand 0, single buffered']
    %13 = vsyncpa [#allocation3], 0
    %14 = vsyncpa [#allocation6], 0
    %15 = vsyncpa [#allocation9], 0
    %16 = vsyncpa [#allocation12], 0
    %17 = vsyncpa [#allocation4], 0
    // Predicated region
    $region2: #{tpu_custom_call.1} parent=1 // pred_check
      _
    $region3: #{tpu_custom_call.1} parent=1 // pred_check_branch
      %19 = sbr.rel (0) target = $region5
    $region4: #{tpu_custom_call.1} parent=1 // pred_region
      %s21 = ssub.s32 256, 256
      %22 = vsyncadd [#allocation3], %s21
      %s23 = sshll.u32 [#allocation2], 4
      %s24 = int_to_ptr.vmem [resolvable:$true] %s23
      %29 = dma.hbm_to_vmem [thread:$0]  %s0, 256, %s24, [#allocation3], 128, 128, 8
    $region5: #{tpu_custom_call.1} parent=1 // pred_fallthru
      _
    // Predicated region
    $region6: #{tpu_custom_call.1} parent=1 // pred_check
      _
    $region7: #{tpu_custom_call.1} parent=1 // pred_check_branch
      %31 = sbr.rel (0) target = $region9
    $region8: #{tpu_custom_call.1} parent=1 // pred_region
      %s33 = ssub.s32 256, 256
      %34 = vsyncadd [#allocation6], %s33
      %s35 = sshll.u32 [#allocation5], 4
      %s36 = int_to_ptr.vmem [resolvable:$true] %s35
      %41 = dma.hbm_to_vmem [thread:$0]  %s1, 256, %s36, [#allocation6], 128, 128, 8
    $region9: #{tpu_custom_call.1} parent=1 // pred_fallthru
      _
    // Predicated region
    $region10: #{tpu_custom_call.1} parent=1 // pred_check
      _
    $region11: #{tpu_custom_call.1} parent=1 // pred_check_branch
      %43 = sbr.rel (0) target = $region13
    $region12: #{tpu_custom_call.1} parent=1 // pred_region
      %s45 = ssub.s32 256, 256
      %46 = vsyncadd [#allocation6], %s45
      %s47 = sshll.u32 [#allocation7], 4
      %s48 = int_to_ptr.vmem [resolvable:$true] %s47
      %53 = dma.hbm_to_vmem [thread:$0]  %s2, 256, %s48, [#allocation6], 128, 128, 8
    $region13: #{tpu_custom_call.1} parent=1 // pred_fallthru
      _
    // Predicated region
    $region14: #{tpu_custom_call.1} parent=1 // pred_check
      _
    $region15: #{tpu_custom_call.1} parent=1 // pred_check_branch
      %55 = sbr.rel (0) target = $region17
    $region16: #{tpu_custom_call.1} parent=1 // pred_region
      %s57 = ssub.s32 2048, 2048
      %58 = vsyncadd [#allocation9], %s57
      %s59 = sshll.u32 [#allocation8], 4
      %s60 = int_to_ptr.vmem [resolvable:$true] %s59
      %65 = dma.hbm_to_vmem [thread:$0]  %s3, 2048, %s60, [#allocation9], 128, 128, 8
    $region17: #{tpu_custom_call.1} parent=1 // pred_fallthru
      _
    // Predicated region
    $region18: #{tpu_custom_call.1} parent=1 // pred_check
      _
    $region19: #{tpu_custom_call.1} parent=1 // pred_check_branch
      %67 = sbr.rel (0) target = $region21
    $region20: #{tpu_custom_call.1} parent=1 // pred_region
      %s69 = ssub.s32 2048, 2048
      %70 = vsyncadd [#allocation9], %s69
      %s71 = sshll.u32 [#allocation10], 4
      %s72 = int_to_ptr.vmem [resolvable:$true] %s71
      %77 = dma.hbm_to_vmem [thread:$0]  %s4, 2048, %s72, [#allocation9], 128, 128, 8
    $region21: #{tpu_custom_call.1} parent=1 // pred_fallthru
      _
    // Predicated region
    $region22: #{tpu_custom_call.1} parent=1 // pred_check
      _
    $region23: #{tpu_custom_call.1} parent=1 // pred_check_branch
      %79 = sbr.rel (0) target = $region25
    $region24: #{tpu_custom_call.1} parent=1 // pred_region
      %s81 = ssub.s32 2048, 2048
      %82 = vsyncadd [#allocation12], %s81
      %s83 = sshll.u32 [#allocation11], 4
      %s84 = int_to_ptr.vmem [resolvable:$true] %s83
      %89 = dma.hbm_to_vmem [thread:$0]  %s5, 2048, %s84, [#allocation12], 128, 128, 8
    $region25: #{tpu_custom_call.1} parent=1 // pred_fallthru
      _
    // Predicated region
    $region26: #{tpu_custom_call.1} parent=1 // pred_check
      _
    $region27: #{tpu_custom_call.1} parent=1 // pred_check_branch
      %91 = sbr.rel (0) target = $region29
    $region28: #{tpu_custom_call.1} parent=1 // pred_region
      %s93 = ssub.s32 2048, 2048
      %94 = vsyncadd [#allocation12], %s93
      %s95 = sshll.u32 [#allocation13], 4
      %s96 = int_to_ptr.vmem [resolvable:$true] %s95
      %101 = dma.hbm_to_vmem [thread:$0]  %s6, 2048, %s96, [#allocation12], 128, 128, 8
    $region29: #{tpu_custom_call.1} parent=1 // pred_fallthru
      _
    // Predicated region
    $region30: #{tpu_custom_call.1} parent=1 // pred_check
      _
    $region31: #{tpu_custom_call.1} parent=1 // pred_check_branch
      %103 = sbr.rel (0) target = $region33
    $region32: #{tpu_custom_call.1} parent=1 // pred_region
      _
    $region33: #{tpu_custom_call.1} parent=1 // pred_fallthru
      _
    // Predicated region
    $region34: #{tpu_custom_call.1} parent=1 // pred_check
      _
    $region35: #{tpu_custom_call.1} parent=1 // pred_check_branch
      %105 = sbr.rel (0) target = $region37
    $region36: #{tpu_custom_call.1} parent=1 // pred_region
      %106 = dma.done [#allocation3], 256
    $region37: #{tpu_custom_call.1} parent=1 // pred_fallthru
      _
    // Predicated region
    $region38: #{tpu_custom_call.1} parent=1 // pred_check
      _
    $region39: #{tpu_custom_call.1} parent=1 // pred_check_branch
      %108 = sbr.rel (0) target = $region41
    $region40: #{tpu_custom_call.1} parent=1 // pred_region
      %109 = dma.done [#allocation6], 256
    $region41: #{tpu_custom_call.1} parent=1 // pred_fallthru
      _
    // Predicated region
    $region42: #{tpu_custom_call.1} parent=1 // pred_check
      _
    $region43: #{tpu_custom_call.1} parent=1 // pred_check_branch
      %111 = sbr.rel (0) target = $region45
    $region44: #{tpu_custom_call.1} parent=1 // pred_region
      %112 = dma.done [#allocation6], 256
    $region45: #{tpu_custom_call.1} parent=1 // pred_fallthru
      _
    // Predicated region
    $region46: #{tpu_custom_call.1} parent=1 // pred_check
      _
    $region47: #{tpu_custom_call.1} parent=1 // pred_check_branch
      %114 = sbr.rel (0) target = $region49
    $region48: #{tpu_custom_call.1} parent=1 // pred_region
      %115 = dma.done [#allocation9], 2048
    $region49: #{tpu_custom_call.1} parent=1 // pred_fallthru
      _
    // Predicated region
    $region50: #{tpu_custom_call.1} parent=1 // pred_check
      _
    $region51: #{tpu_custom_call.1} parent=1 // pred_check_branch
      %117 = sbr.rel (0) target = $region53
    $region52: #{tpu_custom_call.1} parent=1 // pred_region
      %118 = dma.done [#allocation9], 2048
    $region53: #{tpu_custom_call.1} parent=1 // pred_fallthru
      _
    // Predicated region
    $region54: #{tpu_custom_call.1} parent=1 // pred_check
      _
    $region55: #{tpu_custom_call.1} parent=1 // pred_check_branch
      %120 = sbr.rel (0) target = $region57
    $region56: #{tpu_custom_call.1} parent=1 // pred_region
      %121 = dma.done [#allocation12], 2048
    $region57: #{tpu_custom_call.1} parent=1 // pred_fallthru
      _
    // Predicated region
    $region58: #{tpu_custom_call.1} parent=1 // pred_check
      _
    $region59: #{tpu_custom_call.1} parent=1 // pred_check_branch
      %123 = sbr.rel (0) target = $region61
    $region60: #{tpu_custom_call.1} parent=1 // pred_region
      %124 = dma.done [#allocation12], 2048
    $region61: #{tpu_custom_call.1} parent=1 // pred_fallthru
      _
    %v125 = vld [vmem:[#allocation2] sm:$0xff]
    %v126 = vld [vmem:[#allocation2 + $0x8] sm:$0xff]
    %v127 = vld [vmem:[#allocation5] sm:$0xff]
    %v128 = vld [vmem:[#allocation5 + $0x8] sm:$0xff]
    %v129 = vld [vmem:[#allocation7] sm:$0xff]
    %v130 = vld [vmem:[#allocation7 + $0x8] sm:$0xff]
    %v131 = vld [vmem:[#allocation8] sm:$0xff]
    %v132 = vld [vmem:[#allocation8 + $0x8] sm:$0xff]
    %v133 = vld [vmem:[#allocation8 + $0x10] sm:$0xff]
    %v134 = vld [vmem:[#allocation8 + $0x18] sm:$0xff]
    %v135 = vld [vmem:[#allocation8 + $0x20] sm:$0xff]
    %v136 = vld [vmem:[#allocation8 + $0x28] sm:$0xff]
    %v137 = vld [vmem:[#allocation8 + $0x30] sm:$0xff]
    %v138 = vld [vmem:[#allocation8 + $0x38] sm:$0xff]
    %v139 = vld [vmem:[#allocation8 + $0x40] sm:$0xff]
    %v140 = vld [vmem:[#allocation8 + $0x48] sm:$0xff]
    %v141 = vld [vmem:[#allocation8 + $0x50] sm:$0xff]
    %v142 = vld [vmem:[#allocation8 + $0x58] sm:$0xff]
    %v143 = vld [vmem:[#allocation8 + $0x60] sm:$0xff]
    %v144 = vld [vmem:[#allocation8 + $0x68] sm:$0xff]
    %v145 = vld [vmem:[#allocation8 + $0x70] sm:$0xff]
    %v146 = vld [vmem:[#allocation8 + $0x78] sm:$0xff]
    %147 = vmatprep.subr.mxu0 0.0
    %148 = vmatpush1.msra.mxu0 %v146
    %149 = vmatprep.subr.mxu0 0.0
    %150 = vmatpush1.msra.mxu0 %v145
    %151 = vmatprep.subr.mxu0 0.0
    %152 = vmatpush1.msra.mxu0 %v144
    %153 = vmatprep.subr.mxu0 0.0
    %154 = vmatpush1.msra.mxu0 %v143
    %155 = vmatprep.subr.mxu0 0.0
    %156 = vmatpush1.msra.mxu0 %v142
    %157 = vmatprep.subr.mxu0 0.0
    %158 = vmatpush1.msra.mxu0 %v141
    %159 = vmatprep.subr.mxu0 0.0
    %160 = vmatpush1.msra.mxu0 %v140
    %161 = vmatprep.subr.mxu0 0.0
    %162 = vmatpush1.msra.mxu0 %v139
    %163 = vmatprep.subr.mxu0 0.0
    %164 = vmatpush1.msra.mxu0 %v138
    %165 = vmatprep.subr.mxu0 0.0
    %166 = vmatpush1.msra.mxu0 %v137
    %167 = vmatprep.subr.mxu0 0.0
    %168 = vmatpush1.msra.mxu0 %v136
    %169 = vmatprep.subr.mxu0 0.0
    %170 = vmatpush1.msra.mxu0 %v135
    %171 = vmatprep.subr.mxu0 0.0
    %172 = vmatpush1.msra.mxu0 %v134
    %173 = vmatprep.subr.mxu0 0.0
    %174 = vmatpush1.msra.mxu0 %v133
    %175 = vmatprep.subr.mxu0 0.0
    %176 = vmatpush1.msra.mxu0 %v132
    %177 = vmatprep.subr.mxu0 0.0
    %178 = vmatpush1.msra.mxu0 %v131
    %179 = vmatprep.subr.mxu0 0.0
    %180 = vmatpush2.msra.mxu0 0.0
    %181 = vmatprep.subr.mxu0 0.0
    %182 = vmatpush2.msra.mxu0 0.0
    %183 = vmatprep.subr.mxu0 0.0
    %184 = vmatpush2.msra.mxu0 0.0
    %185 = vmatprep.subr.mxu0 0.0
    %186 = vmatpush2.msra.mxu0 0.0
    %187 = vmatprep.subr.mxu0 0.0
    %188 = vmatpush2.msra.mxu0 0.0
    %189 = vmatprep.subr.mxu0 0.0
    %190 = vmatpush2.msra.mxu0 0.0
    %191 = vmatprep.subr.mxu0 0.0
    %192 = vmatpush2.msra.mxu0 0.0
    %193 = vmatprep.subr.mxu0 0.0
    %194 = vmatpush2.msra.mxu0 0.0
    %195 = vmatprep.subr.mxu0 0.0
    %196 = vmatpush2.msra.mxu0 0.0
    %197 = vmatprep.subr.mxu0 0.0
    %198 = vmatpush2.msra.mxu0 0.0
    %199 = vmatprep.subr.mxu0 0.0
    %200 = vmatpush2.msra.mxu0 0.0
    %201 = vmatprep.subr.mxu0 0.0
    %202 = vmatpush2.msra.mxu0 0.0
    %203 = vmatprep.subr.mxu0 0.0
    %204 = vmatpush2.msra.mxu0 0.0
    %205 = vmatprep.subr.mxu0 0.0
    %206 = vmatpush2.msra.mxu0 0.0
    %207 = vmatprep.subr.mxu0 0.0
    %208 = vmatpush2.msra.mxu0 0.0
    %209 = vmatprep.subr.mxu0 0.0
    %210 = vmatpush2.msra.mxu0 0.0
    %211 = vmatprep.mubr.f32.mxu0 0.0
    %212 = vmatmul.mubr.f32.gmra.mxu0 %v125
    %v213 = vpop.f32.mrf.mxu0
    %v214 = vadd.f32 0.0, %v213
    %v215 = vpop.f32.mrf.mxu0
    %216 = vmatprep.mubr.f32.mxu0 0.0
    %217 = vmatmul.mubr.f32.gmra.mxu0 %v126
    %v218 = vpop.f32.mrf.mxu0
    %v219 = vadd.f32 0.0, %v218
    %v220 = vpop.f32.mrf.mxu0
    %221 = vdwg.mxu0
    %v222 = vld [vmem:[#allocation10] sm:$0xff]
    %v223 = vld [vmem:[#allocation10 + $0x8] sm:$0xff]
    %v224 = vld [vmem:[#allocation10 + $0x10] sm:$0xff]
    %v225 = vld [vmem:[#allocation10 + $0x18] sm:$0xff]
    %v226 = vld [vmem:[#allocation10 + $0x20] sm:$0xff]
    %v227 = vld [vmem:[#allocation10 + $0x28] sm:$0xff]
    %v228 = vld [vmem:[#allocation10 + $0x30] sm:$0xff]
    %v229 = vld [vmem:[#allocation10 + $0x38] sm:$0xff]
    %v230 = vld [vmem:[#allocation10 + $0x40] sm:$0xff]
    %v231 = vld [vmem:[#allocation10 + $0x48] sm:$0xff]
    %v232 = vld [vmem:[#allocation10 + $0x50] sm:$0xff]
    %v233 = vld [vmem:[#allocation10 + $0x58] sm:$0xff]
    %v234 = vld [vmem:[#allocation10 + $0x60] sm:$0xff]
    %v235 = vld [vmem:[#allocation10 + $0x68] sm:$0xff]
    %v236 = vld [vmem:[#allocation10 + $0x70] sm:$0xff]
    %v237 = vld [vmem:[#allocation10 + $0x78] sm:$0xff]
    %238 = vmatprep.subr.mxu0 0.0
    %239 = vmatpush1.msra.mxu0 %v237
    %240 = vmatprep.subr.mxu0 0.0
    %241 = vmatpush1.msra.mxu0 %v236
    %242 = vmatprep.subr.mxu0 0.0
    %243 = vmatpush1.msra.mxu0 %v235
    %244 = vmatprep.subr.mxu0 0.0
    %245 = vmatpush1.msra.mxu0 %v234
    %246 = vmatprep.subr.mxu0 0.0
    %247 = vmatpush1.msra.mxu0 %v233
    %248 = vmatprep.subr.mxu0 0.0
    %249 = vmatpush1.msra.mxu0 %v232
    %250 = vmatprep.subr.mxu0 0.0
    %251 = vmatpush1.msra.mxu0 %v231
    %252 = vmatprep.subr.mxu0 0.0
    %253 = vmatpush1.msra.mxu0 %v230
    %254 = vmatprep.subr.mxu0 0.0
    %255 = vmatpush1.msra.mxu0 %v229
    %256 = vmatprep.subr.mxu0 0.0
    %257 = vmatpush1.msra.mxu0 %v228
    %258 = vmatprep.subr.mxu0 0.0
    %259 = vmatpush1.msra.mxu0 %v227
    %260 = vmatprep.subr.mxu0 0.0
    %261 = vmatpush1.msra.mxu0 %v226
    %262 = vmatprep.subr.mxu0 0.0
    %263 = vmatpush1.msra.mxu0 %v225
    %264 = vmatprep.subr.mxu0 0.0
    %265 = vmatpush1.msra.mxu0 %v224
    %266 = vmatprep.subr.mxu0 0.0
    %267 = vmatpush1.msra.mxu0 %v223
    %268 = vmatprep.subr.mxu0 0.0
    %269 = vmatpush1.msra.mxu0 %v222
    %270 = vmatprep.subr.mxu0 0.0
    %271 = vmatpush2.msra.mxu0 0.0
    %272 = vmatprep.subr.mxu0 0.0
    %273 = vmatpush2.msra.mxu0 0.0
    %274 = vmatprep.subr.mxu0 0.0
    %275 = vmatpush2.msra.mxu0 0.0
    %276 = vmatprep.subr.mxu0 0.0
    %277 = vmatpush2.msra.mxu0 0.0
    %278 = vmatprep.subr.mxu0 0.0
    %279 = vmatpush2.msra.mxu0 0.0
    %280 = vmatprep.subr.mxu0 0.0
    %281 = vmatpush2.msra.mxu0 0.0
    %282 = vmatprep.subr.mxu0 0.0
    %283 = vmatpush2.msra.mxu0 0.0
    %284 = vmatprep.subr.mxu0 0.0
    %285 = vmatpush2.msra.mxu0 0.0
    %286 = vmatprep.subr.mxu0 0.0
    %287 = vmatpush2.msra.mxu0 0.0
    %288 = vmatprep.subr.mxu0 0.0
    %289 = vmatpush2.msra.mxu0 0.0
    %290 = vmatprep.subr.mxu0 0.0
    %291 = vmatpush2.msra.mxu0 0.0
    %292 = vmatprep.subr.mxu0 0.0
    %293 = vmatpush2.msra.mxu0 0.0
    %294 = vmatprep.subr.mxu0 0.0
    %295 = vmatpush2.msra.mxu0 0.0
    %296 = vmatprep.subr.mxu0 0.0
    %297 = vmatpush2.msra.mxu0 0.0
    %298 = vmatprep.subr.mxu0 0.0
    %299 = vmatpush2.msra.mxu0 0.0
    %300 = vmatprep.subr.mxu0 0.0
    %301 = vmatpush2.msra.mxu0 0.0
    %302 = vmatprep.mubr.f32.mxu0 0.0
    %303 = vmatmul.mubr.f32.gmra.mxu0 %v129
    %v304 = vpop.f32.mrf.mxu0
    %v305 = vadd.f32 0.0, %v304
    %v306 = vpop.f32.mrf.mxu0
    %307 = vmatprep.mubr.f32.mxu0 0.0
    %308 = vmatmul.mubr.f32.gmra.mxu0 %v130
    %v309 = vpop.f32.mrf.mxu0
    %v310 = vadd.f32 0.0, %v309
    %v311 = vpop.f32.mrf.mxu0
    %312 = vdwg.mxu0
    %v313 = vld [vmem:[#allocation11] sm:$0xff]
    %v314 = vld [vmem:[#allocation11 + $0x8] sm:$0xff]
    %v315 = vld [vmem:[#allocation11 + $0x10] sm:$0xff]
    %v316 = vld [vmem:[#allocation11 + $0x18] sm:$0xff]
    %v317 = vld [vmem:[#allocation11 + $0x20] sm:$0xff]
    %v318 = vld [vmem:[#allocation11 + $0x28] sm:$0xff]
    %v319 = vld [vmem:[#allocation11 + $0x30] sm:$0xff]
    %v320 = vld [vmem:[#allocation11 + $0x38] sm:$0xff]
    %v321 = vld [vmem:[#allocation11 + $0x40] sm:$0xff]
    %v322 = vld [vmem:[#allocation11 + $0x48] sm:$0xff]
    %v323 = vld [vmem:[#allocation11 + $0x50] sm:$0xff]
    %v324 = vld [vmem:[#allocation11 + $0x58] sm:$0xff]
    %v325 = vld [vmem:[#allocation11 + $0x60] sm:$0xff]
    %v326 = vld [vmem:[#allocation11 + $0x68] sm:$0xff]
    %v327 = vld [vmem:[#allocation11 + $0x70] sm:$0xff]
    %v328 = vld [vmem:[#allocation11 + $0x78] sm:$0xff]
    %329 = vmatprep.subr.mxu0 0.0
    %330 = vmatpush1.msra.mxu0 %v328
    %331 = vmatprep.subr.mxu0 0.0
    %332 = vmatpush1.msra.mxu0 %v327
    %333 = vmatprep.subr.mxu0 0.0
    %334 = vmatpush1.msra.mxu0 %v326
    %335 = vmatprep.subr.mxu0 0.0
    %336 = vmatpush1.msra.mxu0 %v325
    %337 = vmatprep.subr.mxu0 0.0
    %338 = vmatpush1.msra.mxu0 %v324
    %339 = vmatprep.subr.mxu0 0.0
    %340 = vmatpush1.msra.mxu0 %v323
    %341 = vmatprep.subr.mxu0 0.0
    %342 = vmatpush1.msra.mxu0 %v322
    %343 = vmatprep.subr.mxu0 0.0
    %344 = vmatpush1.msra.mxu0 %v321
    %345 = vmatprep.subr.mxu0 0.0
    %346 = vmatpush1.msra.mxu0 %v320
    %347 = vmatprep.subr.mxu0 0.0
    %348 = vmatpush1.msra.mxu0 %v319
    %349 = vmatprep.subr.mxu0 0.0
    %350 = vmatpush1.msra.mxu0 %v318
    %351 = vmatprep.subr.mxu0 0.0
    %352 = vmatpush1.msra.mxu0 %v317
    %353 = vmatprep.subr.mxu0 0.0
    %354 = vmatpush1.msra.mxu0 %v316
    %355 = vmatprep.subr.mxu0 0.0
    %356 = vmatpush1.msra.mxu0 %v315
    %357 = vmatprep.subr.mxu0 0.0
    %358 = vmatpush1.msra.mxu0 %v314
    %359 = vmatprep.subr.mxu0 0.0
    %360 = vmatpush1.msra.mxu0 %v313
    %361 = vmatprep.subr.mxu0 0.0
    %362 = vmatpush2.msra.mxu0 0.0
    %363 = vmatprep.subr.mxu0 0.0
    %364 = vmatpush2.msra.mxu0 0.0
    %365 = vmatprep.subr.mxu0 0.0
    %366 = vmatpush2.msra.mxu0 0.0
    %367 = vmatprep.subr.mxu0 0.0
    %368 = vmatpush2.msra.mxu0 0.0
    %369 = vmatprep.subr.mxu0 0.0
    %370 = vmatpush2.msra.mxu0 0.0
    %371 = vmatprep.subr.mxu0 0.0
    %372 = vmatpush2.msra.mxu0 0.0
    %373 = vmatprep.subr.mxu0 0.0
    %374 = vmatpush2.msra.mxu0 0.0
    %375 = vmatprep.subr.mxu0 0.0
    %376 = vmatpush2.msra.mxu0 0.0
    %377 = vmatprep.subr.mxu0 0.0
    %378 = vmatpush2.msra.mxu0 0.0
    %379 = vmatprep.subr.mxu0 0.0
    %380 = vmatpush2.msra.mxu0 0.0
    %381 = vmatprep.subr.mxu0 0.0
    %382 = vmatpush2.msra.mxu0 0.0
    %383 = vmatprep.subr.mxu0 0.0
    %384 = vmatpush2.msra.mxu0 0.0
    %385 = vmatprep.subr.mxu0 0.0
    %386 = vmatpush2.msra.mxu0 0.0
    %387 = vmatprep.subr.mxu0 0.0
    %388 = vmatpush2.msra.mxu0 0.0
    %389 = vmatprep.subr.mxu0 0.0
    %390 = vmatpush2.msra.mxu0 0.0
    %391 = vmatprep.subr.mxu0 0.0
    %392 = vmatpush2.msra.mxu0 0.0
    %393 = vmatprep.mubr.f32.mxu0 0.0
    %394 = vmatmul.mubr.f32.gmra.mxu0 %v127
    %v395 = vpop.f32.mrf.mxu0
    %v396 = vadd.f32 0.0, %v395
    %v397 = vpop.f32.mrf.mxu0
    %398 = vmatprep.mubr.f32.mxu0 0.0
    %399 = vmatmul.mubr.f32.gmra.mxu0 %v128
    %v400 = vpop.f32.mrf.mxu0
    %v401 = vadd.f32 0.0, %v400
    %v402 = vpop.f32.mrf.mxu0
    %403 = vdwg.mxu0
    %vm404 = vcmask 261120
    %v406 = vsel %vm404, %v305, 0
    %v409 = vsel %vm404, %v214, 0
    %411 = vmatprep.subr.mxu0 0.0
    %412 = vmatpush1.xpose.msra.mxu0 0.0
    %413 = vmatprep.subr.mxu0 0.0
    %414 = vmatpush1.xpose.msra.mxu0 0.0
    %415 = vmatprep.subr.mxu0 0.0
    %416 = vmatpush1.xpose.msra.mxu0 0.0
    %417 = vmatprep.subr.mxu0 0.0
    %418 = vmatpush1.xpose.msra.mxu0 0.0
    %419 = vmatprep.subr.mxu0 0.0
    %420 = vmatpush1.xpose.msra.mxu0 0.0
    %421 = vmatprep.subr.mxu0 0.0
    %422 = vmatpush1.xpose.msra.mxu0 0.0
    %423 = vmatprep.subr.mxu0 0.0
    %424 = vmatpush1.xpose.msra.mxu0 0.0
    %425 = vmatprep.subr.mxu0 0.0
    %426 = vmatpush1.xpose.msra.mxu0 0.0
    %427 = vmatprep.subr.mxu0 0.0
    %428 = vmatpush1.xpose.msra.mxu0 0.0
    %429 = vmatprep.subr.mxu0 0.0
    %430 = vmatpush1.xpose.msra.mxu0 0.0
    %431 = vmatprep.subr.mxu0 0.0
    %432 = vmatpush1.xpose.msra.mxu0 0.0
    %433 = vmatprep.subr.mxu0 0.0
    %434 = vmatpush1.xpose.msra.mxu0 0.0
    %435 = vmatprep.subr.mxu0 0.0
    %436 = vmatpush1.xpose.msra.mxu0 0.0
    %437 = vmatprep.subr.mxu0 0.0
    %438 = vmatpush1.xpose.msra.mxu0 0.0
    %439 = vmatprep.subr.mxu0 0.0
    %440 = vmatpush1.xpose.msra.mxu0 0.0
    %441 = vmatprep.subr.mxu0 0.0
    %442 = vmatpush1.xpose.msra.mxu0 %v409
    %443 = vmatprep.subr.mxu0 0.0
    %444 = vmatpush2.xpose.msra.mxu0 0.0
    %445 = vmatprep.subr.mxu0 0.0
    %446 = vmatpush2.xpose.msra.mxu0 0.0
    %447 = vmatprep.subr.mxu0 0.0
    %448 = vmatpush2.xpose.msra.mxu0 0.0
    %449 = vmatprep.subr.mxu0 0.0
    %450 = vmatpush2.xpose.msra.mxu0 0.0
    %451 = vmatprep.subr.mxu0 0.0
    %452 = vmatpush2.xpose.msra.mxu0 0.0
    %453 = vmatprep.subr.mxu0 0.0
    %454 = vmatpush2.xpose.msra.mxu0 0.0
    %455 = vmatprep.subr.mxu0 0.0
    %456 = vmatpush2.xpose.msra.mxu0 0.0
    %457 = vmatprep.subr.mxu0 0.0
    %458 = vmatpush2.xpose.msra.mxu0 0.0
    %459 = vmatprep.subr.mxu0 0.0
    %460 = vmatpush2.xpose.msra.mxu0 0.0
    %461 = vmatprep.subr.mxu0 0.0
    %462 = vmatpush2.xpose.msra.mxu0 0.0
    %463 = vmatprep.subr.mxu0 0.0
    %464 = vmatpush2.xpose.msra.mxu0 0.0
    %465 = vmatprep.subr.mxu0 0.0
    %466 = vmatpush2.xpose.msra.mxu0 0.0
    %467 = vmatprep.subr.mxu0 0.0
    %468 = vmatpush2.xpose.msra.mxu0 0.0
    %469 = vmatprep.subr.mxu0 0.0
    %470 = vmatpush2.xpose.msra.mxu0 0.0
    %471 = vmatprep.subr.mxu0 0.0
    %472 = vmatpush2.xpose.msra.mxu0 0.0
    %473 = vmatprep.subr.mxu0 0.0
    %474 = vmatpush2.xpose.msra.mxu0 0.0
    %475 = vmatprep.mubr.f32.mxu0 0.0
    %476 = vmatmul.mubr.f32.gmra.mxu0 %v406
    %v477 = vpop.f32.mrf.mxu0
    %v478 = vadd.f32 0.0, %v477
    %v479 = vpop.f32.mrf.mxu0
    %480 = vdwg.mxu0
    %v482 = vsel %vm404, %v310, 0
    %v485 = vsel %vm404, %v219, 0
    %487 = vmatprep.subr.mxu0 0.0
    %488 = vmatpush1.xpose.msra.mxu0 0.0
    %489 = vmatprep.subr.mxu0 0.0
    %490 = vmatpush1.xpose.msra.mxu0 0.0
    %491 = vmatprep.subr.mxu0 0.0
    %492 = vmatpush1.xpose.msra.mxu0 0.0
    %493 = vmatprep.subr.mxu0 0.0
    %494 = vmatpush1.xpose.msra.mxu0 0.0
    %495 = vmatprep.subr.mxu0 0.0
    %496 = vmatpush1.xpose.msra.mxu0 0.0
    %497 = vmatprep.subr.mxu0 0.0
    %498 = vmatpush1.xpose.msra.mxu0 0.0
    %499 = vmatprep.subr.mxu0 0.0
    %500 = vmatpush1.xpose.msra.mxu0 0.0
    %501 = vmatprep.subr.mxu0 0.0
    %502 = vmatpush1.xpose.msra.mxu0 0.0
    %503 = vmatprep.subr.mxu0 0.0
    %504 = vmatpush1.xpose.msra.mxu0 0.0
    %505 = vmatprep.subr.mxu0 0.0
    %506 = vmatpush1.xpose.msra.mxu0 0.0
    %507 = vmatprep.subr.mxu0 0.0
    %508 = vmatpush1.xpose.msra.mxu0 0.0
    %509 = vmatprep.subr.mxu0 0.0
    %510 = vmatpush1.xpose.msra.mxu0 0.0
    %511 = vmatprep.subr.mxu0 0.0
    %512 = vmatpush1.xpose.msra.mxu0 0.0
    %513 = vmatprep.subr.mxu0 0.0
    %514 = vmatpush1.xpose.msra.mxu0 0.0
    %515 = vmatprep.subr.mxu0 0.0
    %516 = vmatpush1.xpose.msra.mxu0 0.0
    %517 = vmatprep.subr.mxu0 0.0
    %518 = vmatpush1.xpose.msra.mxu0 %v485
    %519 = vmatprep.subr.mxu0 0.0
    %520 = vmatpush2.xpose.msra.mxu0 0.0
    %521 = vmatprep.subr.mxu0 0.0
    %522 = vmatpush2.xpose.msra.mxu0 0.0
    %523 = vmatprep.subr.mxu0 0.0
    %524 = vmatpush2.xpose.msra.mxu0 0.0
    %525 = vmatprep.subr.mxu0 0.0
    %526 = vmatpush2.xpose.msra.mxu0 0.0
    %527 = vmatprep.subr.mxu0 0.0
    %528 = vmatpush2.xpose.msra.mxu0 0.0
    %529 = vmatprep.subr.mxu0 0.0
    %530 = vmatpush2.xpose.msra.mxu0 0.0
    %531 = vmatprep.subr.mxu0 0.0
    %532 = vmatpush2.xpose.msra.mxu0 0.0
    %533 = vmatprep.subr.mxu0 0.0
    %534 = vmatpush2.xpose.msra.mxu0 0.0
    %535 = vmatprep.subr.mxu0 0.0
    %536 = vmatpush2.xpose.msra.mxu0 0.0
    %537 = vmatprep.subr.mxu0 0.0
    %538 = vmatpush2.xpose.msra.mxu0 0.0
    %539 = vmatprep.subr.mxu0 0.0
    %540 = vmatpush2.xpose.msra.mxu0 0.0
    %541 = vmatprep.subr.mxu0 0.0
    %542 = vmatpush2.xpose.msra.mxu0 0.0
    %543 = vmatprep.subr.mxu0 0.0
    %544 = vmatpush2.xpose.msra.mxu0 0.0
    %545 = vmatprep.subr.mxu0 0.0
    %546 = vmatpush2.xpose.msra.mxu0 0.0
    %547 = vmatprep.subr.mxu0 0.0
    %548 = vmatpush2.xpose.msra.mxu0 0.0
    %549 = vmatprep.subr.mxu0 0.0
    %550 = vmatpush2.xpose.msra.mxu0 0.0
    %551 = vmatprep.mubr.f32.mxu0 0.0
    %552 = vmatmul.mubr.f32.gmra.mxu0 %v482
    %v553 = vpop.f32.mrf.mxu0
    %v554 = vadd.f32 0.0, %v553
    %v555 = vpop.f32.mrf.mxu0
    %556 = vdwg.mxu0
    %vm557 = vcmask 64512
    %v558 = vsel %vm557, %v478, -inf
    %559 = vmax.xlane.f32.xlu0 %v558
    %v560 = vpop.xlane.xlu0 %559
    %v561 = vsel %vm557, %v554, -inf
    %562 = vmax.xlane.f32.xlu0 %v561
    %v563 = vpop.xlane.xlu0 %562
    %v564 = vsub.f32 %v478, %v560
    %v565 = vsub.f32 %v554, %v563
    %v566 = vmul.f32 %v564, 1.442695
    %v567 = vpow.pop %v566
    %v568 = vmul.f32 %v565, 1.442695
    %v569 = vpow.pop %v568
    %v570 = vsel %vm557, %v567, 0.0
    %571 = vadd.xlane.f32.xlu0 %v570
    %v572 = vpop.xlane.xlu0 %571
    %v573 = vsel %vm557, %v569, 0.0
    %574 = vadd.xlane.f32.xlu0 %v573
    %v575 = vpop.xlane.xlu0 %574
    %v576 = vrcp.pop %v572
    %v577 = vmul.f32 %v567, %v576
    %v578 = vrcp.pop %v575
    %v579 = vmul.f32 %v569, %v578
    %v581 = vsel %vm557, %v577, 0
    %583 = vmatprep.subr.mxu0 0.0
    %584 = vmatpush1.msra.mxu0 0.0
    %585 = vmatprep.subr.mxu0 0.0
    %586 = vmatpush1.msra.mxu0 0.0
    %587 = vmatprep.subr.mxu0 0.0
    %588 = vmatpush1.msra.mxu0 0.0
    %589 = vmatprep.subr.mxu0 0.0
    %590 = vmatpush1.msra.mxu0 0.0
    %591 = vmatprep.subr.mxu0 0.0
    %592 = vmatpush1.msra.mxu0 0.0
    %593 = vmatprep.subr.mxu0 0.0
    %594 = vmatpush1.msra.mxu0 0.0
    %595 = vmatprep.subr.mxu0 0.0
    %596 = vmatpush1.msra.mxu0 0.0
    %597 = vmatprep.subr.mxu0 0.0
    %598 = vmatpush1.msra.mxu0 0.0
    %599 = vmatprep.subr.mxu0 0.0
    %600 = vmatpush1.msra.mxu0 0.0
    %601 = vmatprep.subr.mxu0 0.0
    %602 = vmatpush1.msra.mxu0 0.0
    %603 = vmatprep.subr.mxu0 0.0
    %604 = vmatpush1.msra.mxu0 0.0
    %605 = vmatprep.subr.mxu0 0.0
    %606 = vmatpush1.msra.mxu0 0.0
    %607 = vmatprep.subr.mxu0 0.0
    %608 = vmatpush1.msra.mxu0 0.0
    %609 = vmatprep.subr.mxu0 0.0
    %610 = vmatpush1.msra.mxu0 0.0
    %611 = vmatprep.subr.mxu0 0.0
    %612 = vmatpush1.msra.mxu0 0.0
    %613 = vmatprep.subr.mxu0 0.0
    %614 = vmatpush1.msra.mxu0 %v396
    %615 = vmatprep.subr.mxu0 0.0
    %616 = vmatpush2.msra.mxu0 0.0
    %617 = vmatprep.subr.mxu0 0.0
    %618 = vmatpush2.msra.mxu0 0.0
    %619 = vmatprep.subr.mxu0 0.0
    %620 = vmatpush2.msra.mxu0 0.0
    %621 = vmatprep.subr.mxu0 0.0
    %622 = vmatpush2.msra.mxu0 0.0
    %623 = vmatprep.subr.mxu0 0.0
    %624 = vmatpush2.msra.mxu0 0.0
    %625 = vmatprep.subr.mxu0 0.0
    %626 = vmatpush2.msra.mxu0 0.0
    %627 = vmatprep.subr.mxu0 0.0
    %628 = vmatpush2.msra.mxu0 0.0
    %629 = vmatprep.subr.mxu0 0.0
    %630 = vmatpush2.msra.mxu0 0.0
    %631 = vmatprep.subr.mxu0 0.0
    %632 = vmatpush2.msra.mxu0 0.0
    %633 = vmatprep.subr.mxu0 0.0
    %634 = vmatpush2.msra.mxu0 0.0
    %635 = vmatprep.subr.mxu0 0.0
    %636 = vmatpush2.msra.mxu0 0.0
    %637 = vmatprep.subr.mxu0 0.0
    %638 = vmatpush2.msra.mxu0 0.0
    %639 = vmatprep.subr.mxu0 0.0
    %640 = vmatpush2.msra.mxu0 0.0
    %641 = vmatprep.subr.mxu0 0.0
    %642 = vmatpush2.msra.mxu0 0.0
    %643 = vmatprep.subr.mxu0 0.0
    %644 = vmatpush2.msra.mxu0 0.0
    %645 = vmatprep.subr.mxu0 0.0
    %646 = vmatpush2.msra.mxu0 0.0
    %647 = vmatprep.mubr.f32.mxu0 0.0
    %648 = vmatmul.mubr.f32.gmra.mxu0 %v581
    %v649 = vpop.f32.mrf.mxu0
    %v650 = vadd.f32 0.0, %v649
    %v651 = vpop.f32.mrf.mxu0
    %652 = vdwg.mxu0
    %v654 = vsel %vm557, %v579, 0
    %656 = vmatprep.subr.mxu0 0.0
    %657 = vmatpush1.msra.mxu0 0.0
    %658 = vmatprep.subr.mxu0 0.0
    %659 = vmatpush1.msra.mxu0 0.0
    %660 = vmatprep.subr.mxu0 0.0
    %661 = vmatpush1.msra.mxu0 0.0
    %662 = vmatprep.subr.mxu0 0.0
    %663 = vmatpush1.msra.mxu0 0.0
    %664 = vmatprep.subr.mxu0 0.0
    %665 = vmatpush1.msra.mxu0 0.0
    %666 = vmatprep.subr.mxu0 0.0
    %667 = vmatpush1.msra.mxu0 0.0
    %668 = vmatprep.subr.mxu0 0.0
    %669 = vmatpush1.msra.mxu0 0.0
    %670 = vmatprep.subr.mxu0 0.0
    %671 = vmatpush1.msra.mxu0 0.0
    %672 = vmatprep.subr.mxu0 0.0
    %673 = vmatpush1.msra.mxu0 0.0
    %674 = vmatprep.subr.mxu0 0.0
    %675 = vmatpush1.msra.mxu0 0.0
    %676 = vmatprep.subr.mxu0 0.0
    %677 = vmatpush1.msra.mxu0 0.0
    %678 = vmatprep.subr.mxu0 0.0
    %679 = vmatpush1.msra.mxu0 0.0
    %680 = vmatprep.subr.mxu0 0.0
    %681 = vmatpush1.msra.mxu0 0.0
    %682 = vmatprep.subr.mxu0 0.0
    %683 = vmatpush1.msra.mxu0 0.0
    %684 = vmatprep.subr.mxu0 0.0
    %685 = vmatpush1.msra.mxu0 0.0
    %686 = vmatprep.subr.mxu0 0.0
    %687 = vmatpush1.msra.mxu0 %v401
    %688 = vmatprep.subr.mxu0 0.0
    %689 = vmatpush2.msra.mxu0 0.0
    %690 = vmatprep.subr.mxu0 0.0
    %691 = vmatpush2.msra.mxu0 0.0
    %692 = vmatprep.subr.mxu0 0.0
    %693 = vmatpush2.msra.mxu0 0.0
    %694 = vmatprep.subr.mxu0 0.0
    %695 = vmatpush2.msra.mxu0 0.0
    %696 = vmatprep.subr.mxu0 0.0
    %697 = vmatpush2.msra.mxu0 0.0
    %698 = vmatprep.subr.mxu0 0.0
    %699 = vmatpush2.msra.mxu0 0.0
    %700 = vmatprep.subr.mxu0 0.0
    %701 = vmatpush2.msra.mxu0 0.0
    %702 = vmatprep.subr.mxu0 0.0
    %703 = vmatpush2.msra.mxu0 0.0
    %704 = vmatprep.subr.mxu0 0.0
    %705 = vmatpush2.msra.mxu0 0.0
    %706 = vmatprep.subr.mxu0 0.0
    %707 = vmatpush2.msra.mxu0 0.0
    %708 = vmatprep.subr.mxu0 0.0
    %709 = vmatpush2.msra.mxu0 0.0
    %710 = vmatprep.subr.mxu0 0.0
    %711 = vmatpush2.msra.mxu0 0.0
    %712 = vmatprep.subr.mxu0 0.0
    %713 = vmatpush2.msra.mxu0 0.0
    %714 = vmatprep.subr.mxu0 0.0
    %715 = vmatpush2.msra.mxu0 0.0
    %716 = vmatprep.subr.mxu0 0.0
    %717 = vmatpush2.msra.mxu0 0.0
    %718 = vmatprep.subr.mxu0 0.0
    %719 = vmatpush2.msra.mxu0 0.0
    %720 = vmatprep.mubr.f32.mxu0 0.0
    %721 = vmatmul.mubr.f32.gmra.mxu0 %v654
    %v722 = vpop.f32.mrf.mxu0
    %v723 = vadd.f32 0.0, %v722
    %v724 = vpop.f32.mrf.mxu0
    %725 = vdwg.mxu0
    %726 = vrot.lane.b32.xlu0 %v305, 96
    %v727 = vpop.permute.xlu0 %726
    %728 = vrot.lane.b32.xlu0 %v214, 96
    %v729 = vpop.permute.xlu0 %728
    %v730 = vsel %vm404, %v727, 0
    %v732 = vsel %vm404, %v729, 0
    %734 = vmatprep.subr.mxu0 0.0
    %735 = vmatpush1.xpose.msra.mxu0 0.0
    %736 = vmatprep.subr.mxu0 0.0
    %737 = vmatpush1.xpose.msra.mxu0 0.0
    %738 = vmatprep.subr.mxu0 0.0
    %739 = vmatpush1.xpose.msra.mxu0 0.0
    %740 = vmatprep.subr.mxu0 0.0
    %741 = vmatpush1.xpose.msra.mxu0 0.0
    %742 = vmatprep.subr.mxu0 0.0
    %743 = vmatpush1.xpose.msra.mxu0 0.0
    %744 = vmatprep.subr.mxu0 0.0
    %745 = vmatpush1.xpose.msra.mxu0 0.0
    %746 = vmatprep.subr.mxu0 0.0
    %747 = vmatpush1.xpose.msra.mxu0 0.0
    %748 = vmatprep.subr.mxu0 0.0
    %749 = vmatpush1.xpose.msra.mxu0 0.0
    %750 = vmatprep.subr.mxu0 0.0
    %751 = vmatpush1.xpose.msra.mxu0 0.0
    %752 = vmatprep.subr.mxu0 0.0
    %753 = vmatpush1.xpose.msra.mxu0 0.0
    %754 = vmatprep.subr.mxu0 0.0
    %755 = vmatpush1.xpose.msra.mxu0 0.0
    %756 = vmatprep.subr.mxu0 0.0
    %757 = vmatpush1.xpose.msra.mxu0 0.0
    %758 = vmatprep.subr.mxu0 0.0
    %759 = vmatpush1.xpose.msra.mxu0 0.0
    %760 = vmatprep.subr.mxu0 0.0
    %761 = vmatpush1.xpose.msra.mxu0 0.0
    %762 = vmatprep.subr.mxu0 0.0
    %763 = vmatpush1.xpose.msra.mxu0 0.0
    %764 = vmatprep.subr.mxu0 0.0
    %765 = vmatpush1.xpose.msra.mxu0 %v732
    %766 = vmatprep.subr.mxu0 0.0
    %767 = vmatpush2.xpose.msra.mxu0 0.0
    %768 = vmatprep.subr.mxu0 0.0
    %769 = vmatpush2.xpose.msra.mxu0 0.0
    %770 = vmatprep.subr.mxu0 0.0
    %771 = vmatpush2.xpose.msra.mxu0 0.0
    %772 = vmatprep.subr.mxu0 0.0
    %773 = vmatpush2.xpose.msra.mxu0 0.0
    %774 = vmatprep.subr.mxu0 0.0
    %775 = vmatpush2.xpose.msra.mxu0 0.0
    %776 = vmatprep.subr.mxu0 0.0
    %777 = vmatpush2.xpose.msra.mxu0 0.0
    %778 = vmatprep.subr.mxu0 0.0
    %779 = vmatpush2.xpose.msra.mxu0 0.0
    %780 = vmatprep.subr.mxu0 0.0
    %781 = vmatpush2.xpose.msra.mxu0 0.0
    %782 = vmatprep.subr.mxu0 0.0
    %783 = vmatpush2.xpose.msra.mxu0 0.0
    %784 = vmatprep.subr.mxu0 0.0
    %785 = vmatpush2.xpose.msra.mxu0 0.0
    %786 = vmatprep.subr.mxu0 0.0
    %787 = vmatpush2.xpose.msra.mxu0 0.0
    %788 = vmatprep.subr.mxu0 0.0
    %789 = vmatpush2.xpose.msra.mxu0 0.0
    %790 = vmatprep.subr.mxu0 0.0
    %791 = vmatpush2.xpose.msra.mxu0 0.0
    %792 = vmatprep.subr.mxu0 0.0
    %793 = vmatpush2.xpose.msra.mxu0 0.0
    %794 = vmatprep.subr.mxu0 0.0
    %795 = vmatpush2.xpose.msra.mxu0 0.0
    %796 = vmatprep.subr.mxu0 0.0
    %797 = vmatpush2.xpose.msra.mxu0 0.0
    %798 = vmatprep.mubr.f32.mxu0 0.0
    %799 = vmatmul.mubr.f32.gmra.mxu0 %v730
    %v800 = vpop.f32.mrf.mxu0
    %v801 = vadd.f32 0.0, %v800
    %v802 = vpop.f32.mrf.mxu0
    %803 = vdwg.mxu0
    %804 = vrot.lane.b32.xlu0 %v310, 96
    %v805 = vpop.permute.xlu0 %804
    %806 = vrot.lane.b32.xlu0 %v219, 96
    %v807 = vpop.permute.xlu0 %806
    %v808 = vsel %vm404, %v805, 0
    %v810 = vsel %vm404, %v807, 0
    %812 = vmatprep.subr.mxu0 0.0
    %813 = vmatpush1.xpose.msra.mxu0 0.0
    %814 = vmatprep.subr.mxu0 0.0
    %815 = vmatpush1.xpose.msra.mxu0 0.0
    %816 = vmatprep.subr.mxu0 0.0
    %817 = vmatpush1.xpose.msra.mxu0 0.0
    %818 = vmatprep.subr.mxu0 0.0
    %819 = vmatpush1.xpose.msra.mxu0 0.0
    %820 = vmatprep.subr.mxu0 0.0
    %821 = vmatpush1.xpose.msra.mxu0 0.0
    %822 = vmatprep.subr.mxu0 0.0
    %823 = vmatpush1.xpose.msra.mxu0 0.0
    %824 = vmatprep.subr.mxu0 0.0
    %825 = vmatpush1.xpose.msra.mxu0 0.0
    %826 = vmatprep.subr.mxu0 0.0
    %827 = vmatpush1.xpose.msra.mxu0 0.0
    %828 = vmatprep.subr.mxu0 0.0
    %829 = vmatpush1.xpose.msra.mxu0 0.0
    %830 = vmatprep.subr.mxu0 0.0
    %831 = vmatpush1.xpose.msra.mxu0 0.0
    %832 = vmatprep.subr.mxu0 0.0
    %833 = vmatpush1.xpose.msra.mxu0 0.0
    %834 = vmatprep.subr.mxu0 0.0
    %835 = vmatpush1.xpose.msra.mxu0 0.0
    %836 = vmatprep.subr.mxu0 0.0
    %837 = vmatpush1.xpose.msra.mxu0 0.0
    %838 = vmatprep.subr.mxu0 0.0
    %839 = vmatpush1.xpose.msra.mxu0 0.0
    %840 = vmatprep.subr.mxu0 0.0
    %841 = vmatpush1.xpose.msra.mxu0 0.0
    %842 = vmatprep.subr.mxu0 0.0
    %843 = vmatpush1.xpose.msra.mxu0 %v810
    %844 = vmatprep.subr.mxu0 0.0
    %845 = vmatpush2.xpose.msra.mxu0 0.0
    %846 = vmatprep.subr.mxu0 0.0
    %847 = vmatpush2.xpose.msra.mxu0 0.0
    %848 = vmatprep.subr.mxu0 0.0
    %849 = vmatpush2.xpose.msra.mxu0 0.0
    %850 = vmatprep.subr.mxu0 0.0
    %851 = vmatpush2.xpose.msra.mxu0 0.0
    %852 = vmatprep.subr.mxu0 0.0
    %853 = vmatpush2.xpose.msra.mxu0 0.0
    %854 = vmatprep.subr.mxu0 0.0
    %855 = vmatpush2.xpose.msra.mxu0 0.0
    %856 = vmatprep.subr.mxu0 0.0
    %857 = vmatpush2.xpose.msra.mxu0 0.0
    %858 = vmatprep.subr.mxu0 0.0
    %859 = vmatpush2.xpose.msra.mxu0 0.0
    %860 = vmatprep.subr.mxu0 0.0
    %861 = vmatpush2.xpose.msra.mxu0 0.0
    %862 = vmatprep.subr.mxu0 0.0
    %863 = vmatpush2.xpose.msra.mxu0 0.0
    %864 = vmatprep.subr.mxu0 0.0
    %865 = vmatpush2.xpose.msra.mxu0 0.0
    %866 = vmatprep.subr.mxu0 0.0
    %867 = vmatpush2.xpose.msra.mxu0 0.0
    %868 = vmatprep.subr.mxu0 0.0
    %869 = vmatpush2.xpose.msra.mxu0 0.0
    %870 = vmatprep.subr.mxu0 0.0
    %871 = vmatpush2.xpose.msra.mxu0 0.0
    %872 = vmatprep.subr.mxu0 0.0
    %873 = vmatpush2.xpose.msra.mxu0 0.0
    %874 = vmatprep.subr.mxu0 0.0
    %875 = vmatpush2.xpose.msra.mxu0 0.0
    %876 = vmatprep.mubr.f32.mxu0 0.0
    %877 = vmatmul.mubr.f32.gmra.mxu0 %v808
    %v878 = vpop.f32.mrf.mxu0
    %v879 = vadd.f32 0.0, %v878
    %v880 = vpop.f32.mrf.mxu0
    %881 = vdwg.mxu0
    %v882 = vsel %vm557, %v801, -inf
    %883 = vmax.xlane.f32.xlu0 %v882
    %v884 = vpop.xlane.xlu0 %883
    %v885 = vsel %vm557, %v879, -inf
    %886 = vmax.xlane.f32.xlu0 %v885
    %v887 = vpop.xlane.xlu0 %886
    %v888 = vsub.f32 %v801, %v884
    %v889 = vsub.f32 %v879, %v887
    %v890 = vmul.f32 %v888, 1.442695
    %v891 = vpow.pop %v890
    %v892 = vmul.f32 %v889, 1.442695
    %v893 = vpow.pop %v892
    %v894 = vsel %vm557, %v891, 0.0
    %895 = vadd.xlane.f32.xlu0 %v894
    %v896 = vpop.xlane.xlu0 %895
    %v897 = vsel %vm557, %v893, 0.0
    %898 = vadd.xlane.f32.xlu0 %v897
    %v899 = vpop.xlane.xlu0 %898
    %v900 = vrcp.pop %v896
    %v901 = vmul.f32 %v891, %v900
    %v902 = vrcp.pop %v899
    %v903 = vmul.f32 %v893, %v902
    %905 = vrot.lane.b32.xlu0 %v396, 96
    %v906 = vpop.permute.xlu0 %905
    %v909 = vsel %vm557, %v901, 0
    %911 = vmatprep.subr.mxu0 0.0
    %912 = vmatpush1.msra.mxu0 0.0
    %913 = vmatprep.subr.mxu0 0.0
    %914 = vmatpush1.msra.mxu0 0.0
    %915 = vmatprep.subr.mxu0 0.0
    %916 = vmatpush1.msra.mxu0 0.0
    %917 = vmatprep.subr.mxu0 0.0
    %918 = vmatpush1.msra.mxu0 0.0
    %919 = vmatprep.subr.mxu0 0.0
    %920 = vmatpush1.msra.mxu0 0.0
    %921 = vmatprep.subr.mxu0 0.0
    %922 = vmatpush1.msra.mxu0 0.0
    %923 = vmatprep.subr.mxu0 0.0
    %924 = vmatpush1.msra.mxu0 0.0
    %925 = vmatprep.subr.mxu0 0.0
    %926 = vmatpush1.msra.mxu0 0.0
    %927 = vmatprep.subr.mxu0 0.0
    %928 = vmatpush1.msra.mxu0 0.0
    %929 = vmatprep.subr.mxu0 0.0
    %930 = vmatpush1.msra.mxu0 0.0
    %931 = vmatprep.subr.mxu0 0.0
    %932 = vmatpush1.msra.mxu0 0.0
    %933 = vmatprep.subr.mxu0 0.0
    %934 = vmatpush1.msra.mxu0 0.0
    %935 = vmatprep.subr.mxu0 0.0
    %936 = vmatpush1.msra.mxu0 0.0
    %937 = vmatprep.subr.mxu0 0.0
    %938 = vmatpush1.msra.mxu0 0.0
    %939 = vmatprep.subr.mxu0 0.0
    %940 = vmatpush1.msra.mxu0 0.0
    %941 = vmatprep.subr.mxu0 0.0
    %942 = vmatpush1.msra.mxu0 %v906
    %943 = vmatprep.subr.mxu0 0.0
    %944 = vmatpush2.msra.mxu0 0.0
    %945 = vmatprep.subr.mxu0 0.0
    %946 = vmatpush2.msra.mxu0 0.0
    %947 = vmatprep.subr.mxu0 0.0
    %948 = vmatpush2.msra.mxu0 0.0
    %949 = vmatprep.subr.mxu0 0.0
    %950 = vmatpush2.msra.mxu0 0.0
    %951 = vmatprep.subr.mxu0 0.0
    %952 = vmatpush2.msra.mxu0 0.0
    %953 = vmatprep.subr.mxu0 0.0
    %954 = vmatpush2.msra.mxu0 0.0
    %955 = vmatprep.subr.mxu0 0.0
    %956 = vmatpush2.msra.mxu0 0.0
    %957 = vmatprep.subr.mxu0 0.0
    %958 = vmatpush2.msra.mxu0 0.0
    %959 = vmatprep.subr.mxu0 0.0
    %960 = vmatpush2.msra.mxu0 0.0
    %961 = vmatprep.subr.mxu0 0.0
    %962 = vmatpush2.msra.mxu0 0.0
    %963 = vmatprep.subr.mxu0 0.0
    %964 = vmatpush2.msra.mxu0 0.0
    %965 = vmatprep.subr.mxu0 0.0
    %966 = vmatpush2.msra.mxu0 0.0
    %967 = vmatprep.subr.mxu0 0.0
    %968 = vmatpush2.msra.mxu0 0.0
    %969 = vmatprep.subr.mxu0 0.0
    %970 = vmatpush2.msra.mxu0 0.0
    %971 = vmatprep.subr.mxu0 0.0
    %972 = vmatpush2.msra.mxu0 0.0
    %973 = vmatprep.subr.mxu0 0.0
    %974 = vmatpush2.msra.mxu0 0.0
    %975 = vmatprep.mubr.f32.mxu0 0.0
    %976 = vmatmul.mubr.f32.gmra.mxu0 %v909
    %v977 = vpop.f32.mrf.mxu0
    %v978 = vadd.f32 0.0, %v977
    %v979 = vpop.f32.mrf.mxu0
    %980 = vdwg.mxu0
    %982 = vrot.lane.b32.xlu0 %v401, 96
    %v983 = vpop.permute.xlu0 %982
    %v986 = vsel %vm557, %v903, 0
    %988 = vmatprep.subr.mxu0 0.0
    %989 = vmatpush1.msra.mxu0 0.0
    %990 = vmatprep.subr.mxu0 0.0
    %991 = vmatpush1.msra.mxu0 0.0
    %992 = vmatprep.subr.mxu0 0.0
    %993 = vmatpush1.msra.mxu0 0.0
    %994 = vmatprep.subr.mxu0 0.0
    %995 = vmatpush1.msra.mxu0 0.0
    %996 = vmatprep.subr.mxu0 0.0
    %997 = vmatpush1.msra.mxu0 0.0
    %998 = vmatprep.subr.mxu0 0.0
    %999 = vmatpush1.msra.mxu0 0.0
    %1000 = vmatprep.subr.mxu0 0.0
    %1001 = vmatpush1.msra.mxu0 0.0
    %1002 = vmatprep.subr.mxu0 0.0
    %1003 = vmatpush1.msra.mxu0 0.0
    %1004 = vmatprep.subr.mxu0 0.0
    %1005 = vmatpush1.msra.mxu0 0.0
    %1006 = vmatprep.subr.mxu0 0.0
    %1007 = vmatpush1.msra.mxu0 0.0
    %1008 = vmatprep.subr.mxu0 0.0
    %1009 = vmatpush1.msra.mxu0 0.0
    %1010 = vmatprep.subr.mxu0 0.0
    %1011 = vmatpush1.msra.mxu0 0.0
    %1012 = vmatprep.subr.mxu0 0.0
    %1013 = vmatpush1.msra.mxu0 0.0
    %1014 = vmatprep.subr.mxu0 0.0
    %1015 = vmatpush1.msra.mxu0 0.0
    %1016 = vmatprep.subr.mxu0 0.0
    %1017 = vmatpush1.msra.mxu0 0.0
    %1018 = vmatprep.subr.mxu0 0.0
    %1019 = vmatpush1.msra.mxu0 %v983
    %1020 = vmatprep.subr.mxu0 0.0
    %1021 = vmatpush2.msra.mxu0 0.0
    %1022 = vmatprep.subr.mxu0 0.0
    %1023 = vmatpush2.msra.mxu0 0.0
    %1024 = vmatprep.subr.mxu0 0.0
    %1025 = vmatpush2.msra.mxu0 0.0
    %1026 = vmatprep.subr.mxu0 0.0
    %1027 = vmatpush2.msra.mxu0 0.0
    %1028 = vmatprep.subr.mxu0 0.0
    %1029 = vmatpush2.msra.mxu0 0.0
    %1030 = vmatprep.subr.mxu0 0.0
    %1031 = vmatpush2.msra.mxu0 0.0
    %1032 = vmatprep.subr.mxu0 0.0
    %1033 = vmatpush2.msra.mxu0 0.0
    %1034 = vmatprep.subr.mxu0 0.0
    %1035 = vmatpush2.msra.mxu0 0.0
    %1036 = vmatprep.subr.mxu0 0.0
    %1037 = vmatpush2.msra.mxu0 0.0
    %1038 = vmatprep.subr.mxu0 0.0
    %1039 = vmatpush2.msra.mxu0 0.0
    %1040 = vmatprep.subr.mxu0 0.0
    %1041 = vmatpush2.msra.mxu0 0.0
    %1042 = vmatprep.subr.mxu0 0.0
    %1043 = vmatpush2.msra.mxu0 0.0
    %1044 = vmatprep.subr.mxu0 0.0
    %1045 = vmatpush2.msra.mxu0 0.0
    %1046 = vmatprep.subr.mxu0 0.0
    %1047 = vmatpush2.msra.mxu0 0.0
    %1048 = vmatprep.subr.mxu0 0.0
    %1049 = vmatpush2.msra.mxu0 0.0
    %1050 = vmatprep.subr.mxu0 0.0
    %1051 = vmatpush2.msra.mxu0 0.0
    %1052 = vmatprep.mubr.f32.mxu0 0.0
    %1053 = vmatmul.mubr.f32.gmra.mxu0 %v986
    %v1054 = vpop.f32.mrf.mxu0
    %v1055 = vadd.f32 0.0, %v1054
    %v1056 = vpop.f32.mrf.mxu0
    %1057 = vdwg.mxu0
    %1058 = vrot.lane.b32.xlu0 %v305, 64
    %v1059 = vpop.permute.xlu0 %1058
    %1060 = vrot.lane.b32.xlu0 %v214, 64
    %v1061 = vpop.permute.xlu0 %1060
    %v1062 = vsel %vm404, %v1059, 0
    %v1064 = vsel %vm404, %v1061, 0
    %1066 = vmatprep.subr.mxu0 0.0
    %1067 = vmatpush1.xpose.msra.mxu0 0.0
    %1068 = vmatprep.subr.mxu0 0.0
    %1069 = vmatpush1.xpose.msra.mxu0 0.0
    %1070 = vmatprep.subr.mxu0 0.0
    %1071 = vmatpush1.xpose.msra.mxu0 0.0
    %1072 = vmatprep.subr.mxu0 0.0
    %1073 = vmatpush1.xpose.msra.mxu0 0.0
    %1074 = vmatprep.subr.mxu0 0.0
    %1075 = vmatpush1.xpose.msra.mxu0 0.0
    %1076 = vmatprep.subr.mxu0 0.0
    %1077 = vmatpush1.xpose.msra.mxu0 0.0
    %1078 = vmatprep.subr.mxu0 0.0
    %1079 = vmatpush1.xpose.msra.mxu0 0.0
    %1080 = vmatprep.subr.mxu0 0.0
    %1081 = vmatpush1.xpose.msra.mxu0 0.0
    %1082 = vmatprep.subr.mxu0 0.0
    %1083 = vmatpush1.xpose.msra.mxu0 0.0
    %1084 = vmatprep.subr.mxu0 0.0
    %1085 = vmatpush1.xpose.msra.mxu0 0.0
    %1086 = vmatprep.subr.mxu0 0.0
    %1087 = vmatpush1.xpose.msra.mxu0 0.0
    %1088 = vmatprep.subr.mxu0 0.0
    %1089 = vmatpush1.xpose.msra.mxu0 0.0
    %1090 = vmatprep.subr.mxu0 0.0
    %1091 = vmatpush1.xpose.msra.mxu0 0.0
    %1092 = vmatprep.subr.mxu0 0.0
    %1093 = vmatpush1.xpose.msra.mxu0 0.0
    %1094 = vmatprep.subr.mxu0 0.0
    %1095 = vmatpush1.xpose.msra.mxu0 0.0
    %1096 = vmatprep.subr.mxu0 0.0
    %1097 = vmatpush1.xpose.msra.mxu0 %v1064
    %1098 = vmatprep.subr.mxu0 0.0
    %1099 = vmatpush2.xpose.msra.mxu0 0.0
    %1100 = vmatprep.subr.mxu0 0.0
    %1101 = vmatpush2.xpose.msra.mxu0 0.0
    %1102 = vmatprep.subr.mxu0 0.0
    %1103 = vmatpush2.xpose.msra.mxu0 0.0
    %1104 = vmatprep.subr.mxu0 0.0
    %1105 = vmatpush2.xpose.msra.mxu0 0.0
    %1106 = vmatprep.subr.mxu0 0.0
    %1107 = vmatpush2.xpose.msra.mxu0 0.0
    %1108 = vmatprep.subr.mxu0 0.0
    %1109 = vmatpush2.xpose.msra.mxu0 0.0
    %1110 = vmatprep.subr.mxu0 0.0
    %1111 = vmatpush2.xpose.msra.mxu0 0.0
    %1112 = vmatprep.subr.mxu0 0.0
    %1113 = vmatpush2.xpose.msra.mxu0 0.0
    %1114 = vmatprep.subr.mxu0 0.0
    %1115 = vmatpush2.xpose.msra.mxu0 0.0
    %1116 = vmatprep.subr.mxu0 0.0
    %1117 = vmatpush2.xpose.msra.mxu0 0.0
    %1118 = vmatprep.subr.mxu0 0.0
    %1119 = vmatpush2.xpose.msra.mxu0 0.0
    %1120 = vmatprep.subr.mxu0 0.0
    %1121 = vmatpush2.xpose.msra.mxu0 0.0
    %1122 = vmatprep.subr.mxu0 0.0
    %1123 = vmatpush2.xpose.msra.mxu0 0.0
    %1124 = vmatprep.subr.mxu0 0.0
    %1125 = vmatpush2.xpose.msra.mxu0 0.0
    %1126 = vmatprep.subr.mxu0 0.0
    %1127 = vmatpush2.xpose.msra.mxu0 0.0
    %1128 = vmatprep.subr.mxu0 0.0
    %1129 = vmatpush2.xpose.msra.mxu0 0.0
    %1130 = vmatprep.mubr.f32.mxu0 0.0
    %1131 = vmatmul.mubr.f32.gmra.mxu0 %v1062
    %v1132 = vpop.f32.mrf.mxu0
    %v1133 = vadd.f32 0.0, %v1132
    %v1134 = vpop.f32.mrf.mxu0
    %1135 = vdwg.mxu0
    %1136 = vrot.lane.b32.xlu0 %v310, 64
    %v1137 = vpop.permute.xlu0 %1136
    %1138 = vrot.lane.b32.xlu0 %v219, 64
    %v1139 = vpop.permute.xlu0 %1138
    %v1140 = vsel %vm404, %v1137, 0
    %v1142 = vsel %vm404, %v1139, 0
    %1144 = vmatprep.subr.mxu0 0.0
    %1145 = vmatpush1.xpose.msra.mxu0 0.0
    %1146 = vmatprep.subr.mxu0 0.0
    %1147 = vmatpush1.xpose.msra.mxu0 0.0
    %1148 = vmatprep.subr.mxu0 0.0
    %1149 = vmatpush1.xpose.msra.mxu0 0.0
    %1150 = vmatprep.subr.mxu0 0.0
    %1151 = vmatpush1.xpose.msra.mxu0 0.0
    %1152 = vmatprep.subr.mxu0 0.0
    %1153 = vmatpush1.xpose.msra.mxu0 0.0
    %1154 = vmatprep.subr.mxu0 0.0
    %1155 = vmatpush1.xpose.msra.mxu0 0.0
    %1156 = vmatprep.subr.mxu0 0.0
    %1157 = vmatpush1.xpose.msra.mxu0 0.0
    %1158 = vmatprep.subr.mxu0 0.0
    %1159 = vmatpush1.xpose.msra.mxu0 0.0
    %1160 = vmatprep.subr.mxu0 0.0
    %1161 = vmatpush1.xpose.msra.mxu0 0.0
    %1162 = vmatprep.subr.mxu0 0.0
    %1163 = vmatpush1.xpose.msra.mxu0 0.0
    %1164 = vmatprep.subr.mxu0 0.0
    %1165 = vmatpush1.xpose.msra.mxu0 0.0
    %1166 = vmatprep.subr.mxu0 0.0
    %1167 = vmatpush1.xpose.msra.mxu0 0.0
    %1168 = vmatprep.subr.mxu0 0.0
    %1169 = vmatpush1.xpose.msra.mxu0 0.0
    %1170 = vmatprep.subr.mxu0 0.0
    %1171 = vmatpush1.xpose.msra.mxu0 0.0
    %1172 = vmatprep.subr.mxu0 0.0
    %1173 = vmatpush1.xpose.msra.mxu0 0.0
    %1174 = vmatprep.subr.mxu0 0.0
    %1175 = vmatpush1.xpose.msra.mxu0 %v1142
    %1176 = vmatprep.subr.mxu0 0.0
    %1177 = vmatpush2.xpose.msra.mxu0 0.0
    %1178 = vmatprep.subr.mxu0 0.0
    %1179 = vmatpush2.xpose.msra.mxu0 0.0
    %1180 = vmatprep.subr.mxu0 0.0
    %1181 = vmatpush2.xpose.msra.mxu0 0.0
    %1182 = vmatprep.subr.mxu0 0.0
    %1183 = vmatpush2.xpose.msra.mxu0 0.0
    %1184 = vmatprep.subr.mxu0 0.0
    %1185 = vmatpush2.xpose.msra.mxu0 0.0
    %1186 = vmatprep.subr.mxu0 0.0
    %1187 = vmatpush2.xpose.msra.mxu0 0.0
    %1188 = vmatprep.subr.mxu0 0.0
    %1189 = vmatpush2.xpose.msra.mxu0 0.0
    %1190 = vmatprep.subr.mxu0 0.0
    %1191 = vmatpush2.xpose.msra.mxu0 0.0
    %1192 = vmatprep.subr.mxu0 0.0
    %1193 = vmatpush2.xpose.msra.mxu0 0.0
    %1194 = vmatprep.subr.mxu0 0.0
    %1195 = vmatpush2.xpose.msra.mxu0 0.0
    %1196 = vmatprep.subr.mxu0 0.0
    %1197 = vmatpush2.xpose.msra.mxu0 0.0
    %1198 = vmatprep.subr.mxu0 0.0
    %1199 = vmatpush2.xpose.msra.mxu0 0.0
    %1200 = vmatprep.subr.mxu0 0.0
    %1201 = vmatpush2.xpose.msra.mxu0 0.0
    %1202 = vmatprep.subr.mxu0 0.0
    %1203 = vmatpush2.xpose.msra.mxu0 0.0
    %1204 = vmatprep.subr.mxu0 0.0
    %1205 = vmatpush2.xpose.msra.mxu0 0.0
    %1206 = vmatprep.subr.mxu0 0.0
    %1207 = vmatpush2.xpose.msra.mxu0 0.0
    %1208 = vmatprep.mubr.f32.mxu0 0.0
    %1209 = vmatmul.mubr.f32.gmra.mxu0 %v1140
    %v1210 = vpop.f32.mrf.mxu0
    %v1211 = vadd.f32 0.0, %v1210
    %v1212 = vpop.f32.mrf.mxu0
    %1213 = vdwg.mxu0
    %v1214 = vsel %vm557, %v1133, -inf
    %1215 = vmax.xlane.f32.xlu0 %v1214
    %v1216 = vpop.xlane.xlu0 %1215
    %v1217 = vsel %vm557, %v1211, -inf
    %1218 = vmax.xlane.f32.xlu0 %v1217
    %v1219 = vpop.xlane.xlu0 %1218
    %v1220 = vsub.f32 %v1133, %v1216
    %v1221 = vsub.f32 %v1211, %v1219
    %v1222 = vmul.f32 %v1220, 1.442695
    %v1223 = vpow.pop %v1222
    %v1224 = vmul.f32 %v1221, 1.442695
    %v1225 = vpow.pop %v1224
    %v1226 = vsel %vm557, %v1223, 0.0
    %1227 = vadd.xlane.f32.xlu0 %v1226
    %v1228 = vpop.xlane.xlu0 %1227
    %v1229 = vsel %vm557, %v1225, 0.0
    %1230 = vadd.xlane.f32.xlu0 %v1229
    %v1231 = vpop.xlane.xlu0 %1230
    %v1232 = vrcp.pop %v1228
    %v1233 = vmul.f32 %v1223, %v1232
    %v1234 = vrcp.pop %v1231
    %v1235 = vmul.f32 %v1225, %v1234
    %1236 = vrot.lane.b32.xlu0 %v396, 64
    %v1237 = vpop.permute.xlu0 %1236
    %v1240 = vsel %vm557, %v1233, 0
    %1242 = vmatprep.subr.mxu0 0.0
    %1243 = vmatpush1.msra.mxu0 0.0
    %1244 = vmatprep.subr.mxu0 0.0
    %1245 = vmatpush1.msra.mxu0 0.0
    %1246 = vmatprep.subr.mxu0 0.0
    %1247 = vmatpush1.msra.mxu0 0.0
    %1248 = vmatprep.subr.mxu0 0.0
    %1249 = vmatpush1.msra.mxu0 0.0
    %1250 = vmatprep.subr.mxu0 0.0
    %1251 = vmatpush1.msra.mxu0 0.0
    %1252 = vmatprep.subr.mxu0 0.0
    %1253 = vmatpush1.msra.mxu0 0.0
    %1254 = vmatprep.subr.mxu0 0.0
    %1255 = vmatpush1.msra.mxu0 0.0
    %1256 = vmatprep.subr.mxu0 0.0
    %1257 = vmatpush1.msra.mxu0 0.0
    %1258 = vmatprep.subr.mxu0 0.0
    %1259 = vmatpush1.msra.mxu0 0.0
    %1260 = vmatprep.subr.mxu0 0.0
    %1261 = vmatpush1.msra.mxu0 0.0
    %1262 = vmatprep.subr.mxu0 0.0
    %1263 = vmatpush1.msra.mxu0 0.0
    %1264 = vmatprep.subr.mxu0 0.0
    %1265 = vmatpush1.msra.mxu0 0.0
    %1266 = vmatprep.subr.mxu0 0.0
    %1267 = vmatpush1.msra.mxu0 0.0
    %1268 = vmatprep.subr.mxu0 0.0
    %1269 = vmatpush1.msra.mxu0 0.0
    %1270 = vmatprep.subr.mxu0 0.0
    %1271 = vmatpush1.msra.mxu0 0.0
    %1272 = vmatprep.subr.mxu0 0.0
    %1273 = vmatpush1.msra.mxu0 %v1237
    %1274 = vmatprep.subr.mxu0 0.0
    %1275 = vmatpush2.msra.mxu0 0.0
    %1276 = vmatprep.subr.mxu0 0.0
    %1277 = vmatpush2.msra.mxu0 0.0
    %1278 = vmatprep.subr.mxu0 0.0
    %1279 = vmatpush2.msra.mxu0 0.0
    %1280 = vmatprep.subr.mxu0 0.0
    %1281 = vmatpush2.msra.mxu0 0.0
    %1282 = vmatprep.subr.mxu0 0.0
    %1283 = vmatpush2.msra.mxu0 0.0
    %1284 = vmatprep.subr.mxu0 0.0
    %1285 = vmatpush2.msra.mxu0 0.0
    %1286 = vmatprep.subr.mxu0 0.0
    %1287 = vmatpush2.msra.mxu0 0.0
    %1288 = vmatprep.subr.mxu0 0.0
    %1289 = vmatpush2.msra.mxu0 0.0
    %1290 = vmatprep.subr.mxu0 0.0
    %1291 = vmatpush2.msra.mxu0 0.0
    %1292 = vmatprep.subr.mxu0 0.0
    %1293 = vmatpush2.msra.mxu0 0.0
    %1294 = vmatprep.subr.mxu0 0.0
    %1295 = vmatpush2.msra.mxu0 0.0
    %1296 = vmatprep.subr.mxu0 0.0
    %1297 = vmatpush2.msra.mxu0 0.0
    %1298 = vmatprep.subr.mxu0 0.0
    %1299 = vmatpush2.msra.mxu0 0.0
    %1300 = vmatprep.subr.mxu0 0.0
    %1301 = vmatpush2.msra.mxu0 0.0
    %1302 = vmatprep.subr.mxu0 0.0
    %1303 = vmatpush2.msra.mxu0 0.0
    %1304 = vmatprep.subr.mxu0 0.0
    %1305 = vmatpush2.msra.mxu0 0.0
    %1306 = vmatprep.mubr.f32.mxu0 0.0
    %1307 = vmatmul.mubr.f32.gmra.mxu0 %v1240
    %v1308 = vpop.f32.mrf.mxu0
    %v1309 = vadd.f32 0.0, %v1308
    %v1310 = vpop.f32.mrf.mxu0
    %1311 = vdwg.mxu0
    %1312 = vrot.lane.b32.xlu0 %v401, 64
    %v1313 = vpop.permute.xlu0 %1312
    %v1316 = vsel %vm557, %v1235, 0
    %1318 = vmatprep.subr.mxu0 0.0
    %1319 = vmatpush1.msra.mxu0 0.0
    %1320 = vmatprep.subr.mxu0 0.0
    %1321 = vmatpush1.msra.mxu0 0.0
    %1322 = vmatprep.subr.mxu0 0.0
    %1323 = vmatpush1.msra.mxu0 0.0
    %1324 = vmatprep.subr.mxu0 0.0
    %1325 = vmatpush1.msra.mxu0 0.0
    %1326 = vmatprep.subr.mxu0 0.0
    %1327 = vmatpush1.msra.mxu0 0.0
    %1328 = vmatprep.subr.mxu0 0.0
    %1329 = vmatpush1.msra.mxu0 0.0
    %1330 = vmatprep.subr.mxu0 0.0
    %1331 = vmatpush1.msra.mxu0 0.0
    %1332 = vmatprep.subr.mxu0 0.0
    %1333 = vmatpush1.msra.mxu0 0.0
    %1334 = vmatprep.subr.mxu0 0.0
    %1335 = vmatpush1.msra.mxu0 0.0
    %1336 = vmatprep.subr.mxu0 0.0
    %1337 = vmatpush1.msra.mxu0 0.0
    %1338 = vmatprep.subr.mxu0 0.0
    %1339 = vmatpush1.msra.mxu0 0.0
    %1340 = vmatprep.subr.mxu0 0.0
    %1341 = vmatpush1.msra.mxu0 0.0
    %1342 = vmatprep.subr.mxu0 0.0
    %1343 = vmatpush1.msra.mxu0 0.0
    %1344 = vmatprep.subr.mxu0 0.0
    %1345 = vmatpush1.msra.mxu0 0.0
    %1346 = vmatprep.subr.mxu0 0.0
    %1347 = vmatpush1.msra.mxu0 0.0
    %1348 = vmatprep.subr.mxu0 0.0
    %1349 = vmatpush1.msra.mxu0 %v1313
    %1350 = vmatprep.subr.mxu0 0.0
    %1351 = vmatpush2.msra.mxu0 0.0
    %1352 = vmatprep.subr.mxu0 0.0
    %1353 = vmatpush2.msra.mxu0 0.0
    %1354 = vmatprep.subr.mxu0 0.0
    %1355 = vmatpush2.msra.mxu0 0.0
    %1356 = vmatprep.subr.mxu0 0.0
    %1357 = vmatpush2.msra.mxu0 0.0
    %1358 = vmatprep.subr.mxu0 0.0
    %1359 = vmatpush2.msra.mxu0 0.0
    %1360 = vmatprep.subr.mxu0 0.0
    %1361 = vmatpush2.msra.mxu0 0.0
    %1362 = vmatprep.subr.mxu0 0.0
    %1363 = vmatpush2.msra.mxu0 0.0
    %1364 = vmatprep.subr.mxu0 0.0
    %1365 = vmatpush2.msra.mxu0 0.0
    %1366 = vmatprep.subr.mxu0 0.0
    %1367 = vmatpush2.msra.mxu0 0.0
    %1368 = vmatprep.subr.mxu0 0.0
    %1369 = vmatpush2.msra.mxu0 0.0
    %1370 = vmatprep.subr.mxu0 0.0
    %1371 = vmatpush2.msra.mxu0 0.0
    %1372 = vmatprep.subr.mxu0 0.0
    %1373 = vmatpush2.msra.mxu0 0.0
    %1374 = vmatprep.subr.mxu0 0.0
    %1375 = vmatpush2.msra.mxu0 0.0
    %1376 = vmatprep.subr.mxu0 0.0
    %1377 = vmatpush2.msra.mxu0 0.0
    %1378 = vmatprep.subr.mxu0 0.0
    %1379 = vmatpush2.msra.mxu0 0.0
    %1380 = vmatprep.subr.mxu0 0.0
    %1381 = vmatpush2.msra.mxu0 0.0
    %1382 = vmatprep.mubr.f32.mxu0 0.0
    %1383 = vmatmul.mubr.f32.gmra.mxu0 %v1316
    %v1384 = vpop.f32.mrf.mxu0
    %v1385 = vadd.f32 0.0, %v1384
    %v1386 = vpop.f32.mrf.mxu0
    %1387 = vdwg.mxu0
    %1388 = vrot.lane.b32.xlu0 %v305, 32
    %v1389 = vpop.permute.xlu0 %1388
    %1390 = vrot.lane.b32.xlu0 %v214, 32
    %v1391 = vpop.permute.xlu0 %1390
    %v1392 = vsel %vm404, %v1389, 0
    %v1394 = vsel %vm404, %v1391, 0
    %1396 = vmatprep.subr.mxu0 0.0
    %1397 = vmatpush1.xpose.msra.mxu0 0.0
    %1398 = vmatprep.subr.mxu0 0.0
    %1399 = vmatpush1.xpose.msra.mxu0 0.0
    %1400 = vmatprep.subr.mxu0 0.0
    %1401 = vmatpush1.xpose.msra.mxu0 0.0
    %1402 = vmatprep.subr.mxu0 0.0
    %1403 = vmatpush1.xpose.msra.mxu0 0.0
    %1404 = vmatprep.subr.mxu0 0.0
    %1405 = vmatpush1.xpose.msra.mxu0 0.0
    %1406 = vmatprep.subr.mxu0 0.0
    %1407 = vmatpush1.xpose.msra.mxu0 0.0
    %1408 = vmatprep.subr.mxu0 0.0
    %1409 = vmatpush1.xpose.msra.mxu0 0.0
    %1410 = vmatprep.subr.mxu0 0.0
    %1411 = vmatpush1.xpose.msra.mxu0 0.0
    %1412 = vmatprep.subr.mxu0 0.0
    %1413 = vmatpush1.xpose.msra.mxu0 0.0
    %1414 = vmatprep.subr.mxu0 0.0
    %1415 = vmatpush1.xpose.msra.mxu0 0.0
    %1416 = vmatprep.subr.mxu0 0.0
    %1417 = vmatpush1.xpose.msra.mxu0 0.0
    %1418 = vmatprep.subr.mxu0 0.0
    %1419 = vmatpush1.xpose.msra.mxu0 0.0
    %1420 = vmatprep.subr.mxu0 0.0
    %1421 = vmatpush1.xpose.msra.mxu0 0.0
    %1422 = vmatprep.subr.mxu0 0.0
    %1423 = vmatpush1.xpose.msra.mxu0 0.0
    %1424 = vmatprep.subr.mxu0 0.0
    %1425 = vmatpush1.xpose.msra.mxu0 0.0
    %1426 = vmatprep.subr.mxu0 0.0
    %1427 = vmatpush1.xpose.msra.mxu0 %v1394
    %1428 = vmatprep.subr.mxu0 0.0
    %1429 = vmatpush2.xpose.msra.mxu0 0.0
    %1430 = vmatprep.subr.mxu0 0.0
    %1431 = vmatpush2.xpose.msra.mxu0 0.0
    %1432 = vmatprep.subr.mxu0 0.0
    %1433 = vmatpush2.xpose.msra.mxu0 0.0
    %1434 = vmatprep.subr.mxu0 0.0
    %1435 = vmatpush2.xpose.msra.mxu0 0.0
    %1436 = vmatprep.subr.mxu0 0.0
    %1437 = vmatpush2.xpose.msra.mxu0 0.0
    %1438 = vmatprep.subr.mxu0 0.0
    %1439 = vmatpush2.xpose.msra.mxu0 0.0
    %1440 = vmatprep.subr.mxu0 0.0
    %1441 = vmatpush2.xpose.msra.mxu0 0.0
    %1442 = vmatprep.subr.mxu0 0.0
    %1443 = vmatpush2.xpose.msra.mxu0 0.0
    %1444 = vmatprep.subr.mxu0 0.0
    %1445 = vmatpush2.xpose.msra.mxu0 0.0
    %1446 = vmatprep.subr.mxu0 0.0
    %1447 = vmatpush2.xpose.msra.mxu0 0.0
    %1448 = vmatprep.subr.mxu0 0.0
    %1449 = vmatpush2.xpose.msra.mxu0 0.0
    %1450 = vmatprep.subr.mxu0 0.0
    %1451 = vmatpush2.xpose.msra.mxu0 0.0
    %1452 = vmatprep.subr.mxu0 0.0
    %1453 = vmatpush2.xpose.msra.mxu0 0.0
    %1454 = vmatprep.subr.mxu0 0.0
    %1455 = vmatpush2.xpose.msra.mxu0 0.0
    %1456 = vmatprep.subr.mxu0 0.0
    %1457 = vmatpush2.xpose.msra.mxu0 0.0
    %1458 = vmatprep.subr.mxu0 0.0
    %1459 = vmatpush2.xpose.msra.mxu0 0.0
    %1460 = vmatprep.mubr.f32.mxu0 0.0
    %1461 = vmatmul.mubr.f32.gmra.mxu0 %v1392
    %v1462 = vpop.f32.mrf.mxu0
    %v1463 = vadd.f32 0.0, %v1462
    %v1464 = vpop.f32.mrf.mxu0
    %1465 = vdwg.mxu0
    %1466 = vrot.lane.b32.xlu0 %v310, 32
    %v1467 = vpop.permute.xlu0 %1466
    %1468 = vrot.lane.b32.xlu0 %v219, 32
    %v1469 = vpop.permute.xlu0 %1468
    %v1470 = vsel %vm404, %v1467, 0
    %v1472 = vsel %vm404, %v1469, 0
    %1474 = vmatprep.subr.mxu0 0.0
    %1475 = vmatpush1.xpose.msra.mxu0 0.0
    %1476 = vmatprep.subr.mxu0 0.0
    %1477 = vmatpush1.xpose.msra.mxu0 0.0
    %1478 = vmatprep.subr.mxu0 0.0
    %1479 = vmatpush1.xpose.msra.mxu0 0.0
    %1480 = vmatprep.subr.mxu0 0.0
    %1481 = vmatpush1.xpose.msra.mxu0 0.0
    %1482 = vmatprep.subr.mxu0 0.0
    %1483 = vmatpush1.xpose.msra.mxu0 0.0
    %1484 = vmatprep.subr.mxu0 0.0
    %1485 = vmatpush1.xpose.msra.mxu0 0.0
    %1486 = vmatprep.subr.mxu0 0.0
    %1487 = vmatpush1.xpose.msra.mxu0 0.0
    %1488 = vmatprep.subr.mxu0 0.0
    %1489 = vmatpush1.xpose.msra.mxu0 0.0
    %1490 = vmatprep.subr.mxu0 0.0
    %1491 = vmatpush1.xpose.msra.mxu0 0.0
    %1492 = vmatprep.subr.mxu0 0.0
    %1493 = vmatpush1.xpose.msra.mxu0 0.0
    %1494 = vmatprep.subr.mxu0 0.0
    %1495 = vmatpush1.xpose.msra.mxu0 0.0
    %1496 = vmatprep.subr.mxu0 0.0
    %1497 = vmatpush1.xpose.msra.mxu0 0.0
    %1498 = vmatprep.subr.mxu0 0.0
    %1499 = vmatpush1.xpose.msra.mxu0 0.0
    %1500 = vmatprep.subr.mxu0 0.0
    %1501 = vmatpush1.xpose.msra.mxu0 0.0
    %1502 = vmatprep.subr.mxu0 0.0
    %1503 = vmatpush1.xpose.msra.mxu0 0.0
    %1504 = vmatprep.subr.mxu0 0.0
    %1505 = vmatpush1.xpose.msra.mxu0 %v1472
    %1506 = vmatprep.subr.mxu0 0.0
    %1507 = vmatpush2.xpose.msra.mxu0 0.0
    %1508 = vmatprep.subr.mxu0 0.0
    %1509 = vmatpush2.xpose.msra.mxu0 0.0
    %1510 = vmatprep.subr.mxu0 0.0
    %1511 = vmatpush2.xpose.msra.mxu0 0.0
    %1512 = vmatprep.subr.mxu0 0.0
    %1513 = vmatpush2.xpose.msra.mxu0 0.0
    %1514 = vmatprep.subr.mxu0 0.0
    %1515 = vmatpush2.xpose.msra.mxu0 0.0
    %1516 = vmatprep.subr.mxu0 0.0
    %1517 = vmatpush2.xpose.msra.mxu0 0.0
    %1518 = vmatprep.subr.mxu0 0.0
    %1519 = vmatpush2.xpose.msra.mxu0 0.0
    %1520 = vmatprep.subr.mxu0 0.0
    %1521 = vmatpush2.xpose.msra.mxu0 0.0
    %1522 = vmatprep.subr.mxu0 0.0
    %1523 = vmatpush2.xpose.msra.mxu0 0.0
    %1524 = vmatprep.subr.mxu0 0.0
    %1525 = vmatpush2.xpose.msra.mxu0 0.0
    %1526 = vmatprep.subr.mxu0 0.0
    %1527 = vmatpush2.xpose.msra.mxu0 0.0
    %1528 = vmatprep.subr.mxu0 0.0
    %1529 = vmatpush2.xpose.msra.mxu0 0.0
    %1530 = vmatprep.subr.mxu0 0.0
    %1531 = vmatpush2.xpose.msra.mxu0 0.0
    %1532 = vmatprep.subr.mxu0 0.0
    %1533 = vmatpush2.xpose.msra.mxu0 0.0
    %1534 = vmatprep.subr.mxu0 0.0
    %1535 = vmatpush2.xpose.msra.mxu0 0.0
    %1536 = vmatprep.subr.mxu0 0.0
    %1537 = vmatpush2.xpose.msra.mxu0 0.0
    %1538 = vmatprep.mubr.f32.mxu0 0.0
    %1539 = vmatmul.mubr.f32.gmra.mxu0 %v1470
    %v1540 = vpop.f32.mrf.mxu0
    %v1541 = vadd.f32 0.0, %v1540
    %v1542 = vpop.f32.mrf.mxu0
    %1543 = vdwg.mxu0
    %v1544 = vsel %vm557, %v1463, -inf
    %1545 = vmax.xlane.f32.xlu0 %v1544
    %v1546 = vpop.xlane.xlu0 %1545
    %v1547 = vsel %vm557, %v1541, -inf
    %1548 = vmax.xlane.f32.xlu0 %v1547
    %v1549 = vpop.xlane.xlu0 %1548
    %v1550 = vsub.f32 %v1463, %v1546
    %v1551 = vsub.f32 %v1541, %v1549
    %v1552 = vmul.f32 %v1550, 1.442695
    %v1553 = vpow.pop %v1552
    %v1554 = vmul.f32 %v1551, 1.442695
    %v1555 = vpow.pop %v1554
    %v1556 = vsel %vm557, %v1553, 0.0
    %1557 = vadd.xlane.f32.xlu0 %v1556
    %v1558 = vpop.xlane.xlu0 %1557
    %v1559 = vsel %vm557, %v1555, 0.0
    %1560 = vadd.xlane.f32.xlu0 %v1559
    %v1561 = vpop.xlane.xlu0 %1560
    %v1562 = vrcp.pop %v1558
    %v1563 = vmul.f32 %v1553, %v1562
    %v1564 = vrcp.pop %v1561
    %v1565 = vmul.f32 %v1555, %v1564
    %1566 = vrot.lane.b32.xlu0 %v396, 32
    %v1567 = vpop.permute.xlu0 %1566
    %v1570 = vsel %vm557, %v1563, 0
    %1572 = vmatprep.subr.mxu0 0.0
    %1573 = vmatpush1.msra.mxu0 0.0
    %1574 = vmatprep.subr.mxu0 0.0
    %1575 = vmatpush1.msra.mxu0 0.0
    %1576 = vmatprep.subr.mxu0 0.0
    %1577 = vmatpush1.msra.mxu0 0.0
    %1578 = vmatprep.subr.mxu0 0.0
    %1579 = vmatpush1.msra.mxu0 0.0
    %1580 = vmatprep.subr.mxu0 0.0
    %1581 = vmatpush1.msra.mxu0 0.0
    %1582 = vmatprep.subr.mxu0 0.0
    %1583 = vmatpush1.msra.mxu0 0.0
    %1584 = vmatprep.subr.mxu0 0.0
    %1585 = vmatpush1.msra.mxu0 0.0
    %1586 = vmatprep.subr.mxu0 0.0
    %1587 = vmatpush1.msra.mxu0 0.0
    %1588 = vmatprep.subr.mxu0 0.0
    %1589 = vmatpush1.msra.mxu0 0.0
    %1590 = vmatprep.subr.mxu0 0.0
    %1591 = vmatpush1.msra.mxu0 0.0
    %1592 = vmatprep.subr.mxu0 0.0
    %1593 = vmatpush1.msra.mxu0 0.0
    %1594 = vmatprep.subr.mxu0 0.0
    %1595 = vmatpush1.msra.mxu0 0.0
    %1596 = vmatprep.subr.mxu0 0.0
    %1597 = vmatpush1.msra.mxu0 0.0
    %1598 = vmatprep.subr.mxu0 0.0
    %1599 = vmatpush1.msra.mxu0 0.0
    %1600 = vmatprep.subr.mxu0 0.0
    %1601 = vmatpush1.msra.mxu0 0.0
    %1602 = vmatprep.subr.mxu0 0.0
    %1603 = vmatpush1.msra.mxu0 %v1567
    %1604 = vmatprep.subr.mxu0 0.0
    %1605 = vmatpush2.msra.mxu0 0.0
    %1606 = vmatprep.subr.mxu0 0.0
    %1607 = vmatpush2.msra.mxu0 0.0
    %1608 = vmatprep.subr.mxu0 0.0
    %1609 = vmatpush2.msra.mxu0 0.0
    %1610 = vmatprep.subr.mxu0 0.0
    %1611 = vmatpush2.msra.mxu0 0.0
    %1612 = vmatprep.subr.mxu0 0.0
    %1613 = vmatpush2.msra.mxu0 0.0
    %1614 = vmatprep.subr.mxu0 0.0
    %1615 = vmatpush2.msra.mxu0 0.0
    %1616 = vmatprep.subr.mxu0 0.0
    %1617 = vmatpush2.msra.mxu0 0.0
    %1618 = vmatprep.subr.mxu0 0.0
    %1619 = vmatpush2.msra.mxu0 0.0
    %1620 = vmatprep.subr.mxu0 0.0
    %1621 = vmatpush2.msra.mxu0 0.0
    %1622 = vmatprep.subr.mxu0 0.0
    %1623 = vmatpush2.msra.mxu0 0.0
    %1624 = vmatprep.subr.mxu0 0.0
    %1625 = vmatpush2.msra.mxu0 0.0
    %1626 = vmatprep.subr.mxu0 0.0
    %1627 = vmatpush2.msra.mxu0 0.0
    %1628 = vmatprep.subr.mxu0 0.0
    %1629 = vmatpush2.msra.mxu0 0.0
    %1630 = vmatprep.subr.mxu0 0.0
    %1631 = vmatpush2.msra.mxu0 0.0
    %1632 = vmatprep.subr.mxu0 0.0
    %1633 = vmatpush2.msra.mxu0 0.0
    %1634 = vmatprep.subr.mxu0 0.0
    %1635 = vmatpush2.msra.mxu0 0.0
    %1636 = vmatprep.mubr.f32.mxu0 0.0
    %1637 = vmatmul.mubr.f32.gmra.mxu0 %v1570
    %v1638 = vpop.f32.mrf.mxu0
    %v1639 = vadd.f32 0.0, %v1638
    %v1640 = vpop.f32.mrf.mxu0
    %1641 = vdwg.mxu0
    %1642 = vrot.lane.b32.xlu0 %v401, 32
    %v1643 = vpop.permute.xlu0 %1642
    %v1646 = vsel %vm557, %v1565, 0
    %1648 = vmatprep.subr.mxu0 0.0
    %1649 = vmatpush1.msra.mxu0 0.0
    %1650 = vmatprep.subr.mxu0 0.0
    %1651 = vmatpush1.msra.mxu0 0.0
    %1652 = vmatprep.subr.mxu0 0.0
    %1653 = vmatpush1.msra.mxu0 0.0
    %1654 = vmatprep.subr.mxu0 0.0
    %1655 = vmatpush1.msra.mxu0 0.0
    %1656 = vmatprep.subr.mxu0 0.0
    %1657 = vmatpush1.msra.mxu0 0.0
    %1658 = vmatprep.subr.mxu0 0.0
    %1659 = vmatpush1.msra.mxu0 0.0
    %1660 = vmatprep.subr.mxu0 0.0
    %1661 = vmatpush1.msra.mxu0 0.0
    %1662 = vmatprep.subr.mxu0 0.0
    %1663 = vmatpush1.msra.mxu0 0.0
    %1664 = vmatprep.subr.mxu0 0.0
    %1665 = vmatpush1.msra.mxu0 0.0
    %1666 = vmatprep.subr.mxu0 0.0
    %1667 = vmatpush1.msra.mxu0 0.0
    %1668 = vmatprep.subr.mxu0 0.0
    %1669 = vmatpush1.msra.mxu0 0.0
    %1670 = vmatprep.subr.mxu0 0.0
    %1671 = vmatpush1.msra.mxu0 0.0
    %1672 = vmatprep.subr.mxu0 0.0
    %1673 = vmatpush1.msra.mxu0 0.0
    %1674 = vmatprep.subr.mxu0 0.0
    %1675 = vmatpush1.msra.mxu0 0.0
    %1676 = vmatprep.subr.mxu0 0.0
    %1677 = vmatpush1.msra.mxu0 0.0
    %1678 = vmatprep.subr.mxu0 0.0
    %1679 = vmatpush1.msra.mxu0 %v1643
    %1680 = vmatprep.subr.mxu0 0.0
    %1681 = vmatpush2.msra.mxu0 0.0
    %1682 = vmatprep.subr.mxu0 0.0
    %1683 = vmatpush2.msra.mxu0 0.0
    %1684 = vmatprep.subr.mxu0 0.0
    %1685 = vmatpush2.msra.mxu0 0.0
    %1686 = vmatprep.subr.mxu0 0.0
    %1687 = vmatpush2.msra.mxu0 0.0
    %1688 = vmatprep.subr.mxu0 0.0
    %1689 = vmatpush2.msra.mxu0 0.0
    %1690 = vmatprep.subr.mxu0 0.0
    %1691 = vmatpush2.msra.mxu0 0.0
    %1692 = vmatprep.subr.mxu0 0.0
    %1693 = vmatpush2.msra.mxu0 0.0
    %1694 = vmatprep.subr.mxu0 0.0
    %1695 = vmatpush2.msra.mxu0 0.0
    %1696 = vmatprep.subr.mxu0 0.0
    %1697 = vmatpush2.msra.mxu0 0.0
    %1698 = vmatprep.subr.mxu0 0.0
    %1699 = vmatpush2.msra.mxu0 0.0
    %1700 = vmatprep.subr.mxu0 0.0
    %1701 = vmatpush2.msra.mxu0 0.0
    %1702 = vmatprep.subr.mxu0 0.0
    %1703 = vmatpush2.msra.mxu0 0.0
    %1704 = vmatprep.subr.mxu0 0.0
    %1705 = vmatpush2.msra.mxu0 0.0
    %1706 = vmatprep.subr.mxu0 0.0
    %1707 = vmatpush2.msra.mxu0 0.0
    %1708 = vmatprep.subr.mxu0 0.0
    %1709 = vmatpush2.msra.mxu0 0.0
    %1710 = vmatprep.subr.mxu0 0.0
    %1711 = vmatpush2.msra.mxu0 0.0
    %1712 = vmatprep.mubr.f32.mxu0 0.0
    %1713 = vmatmul.mubr.f32.gmra.mxu0 %v1646
    %v1714 = vpop.f32.mrf.mxu0
    %v1715 = vadd.f32 0.0, %v1714
    %v1716 = vpop.f32.mrf.mxu0
    %1717 = vdwg.mxu0
    %1720 = vrot.lane.b32.xlu0 %v978, 32
    %v1721 = vpop.permute.xlu0 %1720
    %1722 = vrot.lane.b32.xlu0 %v1055, 32
    %v1723 = vpop.permute.xlu0 %1722
    %1728 = vrot.lane.b32.xlu0 %v1309, 64
    %v1729 = vpop.permute.xlu0 %1728
    %1730 = vrot.lane.b32.xlu0 %v1385, 64
    %v1731 = vpop.permute.xlu0 %1730
    %1736 = vrot.lane.b32.xlu0 %v1639, 96
    %v1737 = vpop.permute.xlu0 %1736
    %1738 = vrot.lane.b32.xlu0 %v1715, 96
    %v1739 = vpop.permute.xlu0 %1738
    %v1742 = vsel %vm404, %v650, %v1721
    %v1743 = vsel %vm404, %v723, %v1723
    %vm1744 = vcmask 523264
    %v1745 = vsel %vm1744, %v1742, %v1729
    %v1746 = vsel %vm1744, %v1743, %v1731
    %vm1747 = vcmask 785408
    %v1748 = vsel %vm1747, %v1745, %v1737
    %v1749 = vsel %vm1747, %v1746, %v1739
    %v1750 = vld [vmem:[#allocation13] sm:$0xff]
    %v1751 = vld [vmem:[#allocation13 + $0x8] sm:$0xff]
    %v1752 = vld [vmem:[#allocation13 + $0x10] sm:$0xff]
    %v1753 = vld [vmem:[#allocation13 + $0x18] sm:$0xff]
    %v1754 = vld [vmem:[#allocation13 + $0x20] sm:$0xff]
    %v1755 = vld [vmem:[#allocation13 + $0x28] sm:$0xff]
    %v1756 = vld [vmem:[#allocation13 + $0x30] sm:$0xff]
    %v1757 = vld [vmem:[#allocation13 + $0x38] sm:$0xff]
    %v1758 = vld [vmem:[#allocation13 + $0x40] sm:$0xff]
    %v1759 = vld [vmem:[#allocation13 + $0x48] sm:$0xff]
    %v1760 = vld [vmem:[#allocation13 + $0x50] sm:$0xff]
    %v1761 = vld [vmem:[#allocation13 + $0x58] sm:$0xff]
    %v1762 = vld [vmem:[#allocation13 + $0x60] sm:$0xff]
    %v1763 = vld [vmem:[#allocation13 + $0x68] sm:$0xff]
    %v1764 = vld [vmem:[#allocation13 + $0x70] sm:$0xff]
    %v1765 = vld [vmem:[#allocation13 + $0x78] sm:$0xff]
    %v1766 = vld [vmem:[%s7] sm:$0x1]
    %v1768 = vlaneseq
    %v1769 = vshrl.u32 %v1768, 7
    %v1770 = vsub.s32 0, %v1769
    %v1771 = vrot.slane %v1766, %v1770
    %1773 = vmatprep.subr.mxu0 0.0
    %1774 = vmatpush1.msra.mxu0 %v1765
    %1775 = vmatprep.subr.mxu0 0.0
    %1776 = vmatpush1.msra.mxu0 %v1764
    %1777 = vmatprep.subr.mxu0 0.0
    %1778 = vmatpush1.msra.mxu0 %v1763
    %1779 = vmatprep.subr.mxu0 0.0
    %1780 = vmatpush1.msra.mxu0 %v1762
    %1781 = vmatprep.subr.mxu0 0.0
    %1782 = vmatpush1.msra.mxu0 %v1761
    %1783 = vmatprep.subr.mxu0 0.0
    %1784 = vmatpush1.msra.mxu0 %v1760
    %1785 = vmatprep.subr.mxu0 0.0
    %1786 = vmatpush1.msra.mxu0 %v1759
    %1787 = vmatprep.subr.mxu0 0.0
    %1788 = vmatpush1.msra.mxu0 %v1758
    %1789 = vmatprep.subr.mxu0 0.0
    %1790 = vmatpush1.msra.mxu0 %v1757
    %1791 = vmatprep.subr.mxu0 0.0
    %1792 = vmatpush1.msra.mxu0 %v1756
    %1793 = vmatprep.subr.mxu0 0.0
    %1794 = vmatpush1.msra.mxu0 %v1755
    %1795 = vmatprep.subr.mxu0 0.0
    %1796 = vmatpush1.msra.mxu0 %v1754
    %1797 = vmatprep.subr.mxu0 0.0
    %1798 = vmatpush1.msra.mxu0 %v1753
    %1799 = vmatprep.subr.mxu0 0.0
    %1800 = vmatpush1.msra.mxu0 %v1752
    %1801 = vmatprep.subr.mxu0 0.0
    %1802 = vmatpush1.msra.mxu0 %v1751
    %1803 = vmatprep.subr.mxu0 0.0
    %1804 = vmatpush1.msra.mxu0 %v1750
    %1805 = vmatprep.subr.mxu0 0.0
    %1806 = vmatpush2.msra.mxu0 0.0
    %1807 = vmatprep.subr.mxu0 0.0
    %1808 = vmatpush2.msra.mxu0 0.0
    %1809 = vmatprep.subr.mxu0 0.0
    %1810 = vmatpush2.msra.mxu0 0.0
    %1811 = vmatprep.subr.mxu0 0.0
    %1812 = vmatpush2.msra.mxu0 0.0
    %1813 = vmatprep.subr.mxu0 0.0
    %1814 = vmatpush2.msra.mxu0 0.0
    %1815 = vmatprep.subr.mxu0 0.0
    %1816 = vmatpush2.msra.mxu0 0.0
    %1817 = vmatprep.subr.mxu0 0.0
    %1818 = vmatpush2.msra.mxu0 0.0
    %1819 = vmatprep.subr.mxu0 0.0
    %1820 = vmatpush2.msra.mxu0 0.0
    %1821 = vmatprep.subr.mxu0 0.0
    %1822 = vmatpush2.msra.mxu0 0.0
    %1823 = vmatprep.subr.mxu0 0.0
    %1824 = vmatpush2.msra.mxu0 0.0
    %1825 = vmatprep.subr.mxu0 0.0
    %1826 = vmatpush2.msra.mxu0 0.0
    %1827 = vmatprep.subr.mxu0 0.0
    %1828 = vmatpush2.msra.mxu0 0.0
    %1829 = vmatprep.subr.mxu0 0.0
    %1830 = vmatpush2.msra.mxu0 0.0
    %1831 = vmatprep.subr.mxu0 0.0
    %1832 = vmatpush2.msra.mxu0 0.0
    %1833 = vmatprep.subr.mxu0 0.0
    %1834 = vmatpush2.msra.mxu0 0.0
    %1835 = vmatprep.subr.mxu0 0.0
    %1836 = vmatpush2.msra.mxu0 0.0
    %1837 = vmatprep.mubr.f32.mxu0 0.0
    %1838 = vmatmul.mubr.f32.gmra.mxu0 %v1748
    %v1839 = vpop.f32.mrf.mxu0
    %v1840 = vadd.f32 %v1771, %v1839
    %v1841 = vpop.f32.mrf.mxu0
    %1842 = vmatprep.mubr.f32.mxu0 0.0
    %1843 = vmatmul.mubr.f32.gmra.mxu0 %v1749
    %v1844 = vpop.f32.mrf.mxu0
    %v1845 = vadd.f32 %v1771, %v1844
    %v1846 = vpop.f32.mrf.mxu0
    %1847 = vdwg.mxu0
    %1848 = vst [vmem:[#allocation14] sm:$0xff] %v1840
    %1849 = vst [vmem:[#allocation14 + $0x8] sm:$0xff] %v1845
    // Predicated region
    $region62: #{tpu_custom_call.1} parent=1 // pred_check
      _
    $region63: #{tpu_custom_call.1} parent=1 // pred_check_branch
      %1851 = sbr.rel (0) target = $region65
    $region64: #{tpu_custom_call.1} parent=1 // pred_region
      %s1853 = ssub.s32 256, 256
      %1854 = vsyncadd [#allocation4], %s1853
      %s1855 = sshll.u32 [#allocation14], 4
      %s1856 = int_to_ptr.vmem [resolvable:$true] %s1855
      %1861 = dma.vmem_to_hbm [thread:$0]  %s1856, 256, %s8, [#allocation4], 128, 128, 8
    $region65: #{tpu_custom_call.1} parent=1 // pred_fallthru
      _
    // Predicated region
    $region66: #{tpu_custom_call.1} parent=1 // pred_check
      _
    $region67: #{tpu_custom_call.1} parent=1 // pred_check_branch
      %1863 = sbr.rel (0) target = $region69
    $region68: #{tpu_custom_call.1} parent=1 // pred_region
      %1864 = dma.done [#allocation4], 256
    $region69: #{tpu_custom_call.1} parent=1 // pred_fallthru
      _
    %1865 = vsyncpa [#allocation3], 1
    %1866 = vsyncpa [#allocation6], 1
    %1867 = vsyncpa [#allocation9], 1
    %1868 = vsyncpa [#allocation12], 1
    %1869 = vsyncpa [#allocation4], 1

</llo_original>
